<compile_context>
chip_gen: v6e
topology: v6e:2x2x1
jax: 0.10.0
libtpu: 0.0.40
codegen_flags: <defaults>
</compile_context>

<pallas_src>
import jax
import jax.numpy as jnp
from jax.experimental import pallas as pl
from jax.experimental.pallas import tpu as pltpu


# --------------------------------------------------------------------------
# Kernel 1: GRU cell + Luong 'dot' attention + concat layer (single block).
# --------------------------------------------------------------------------
def decoder_state_kernel(emb_ref, hprev_ref, enc_ref,
                         wih_ref, whh_ref, bi_ref, bhn_ref,
                         wc_ref, bc_ref,
                         cc_ref, hid_ref):
    f32 = jnp.float32
    bf16 = jnp.bfloat16
    H = hprev_ref.shape[1]

    x = emb_ref[...]                     # (B, H)  bf16 embedded step (dropout = identity)
    h = hprev_ref[...]                   # (B, H)  f32 previous hidden

    # GRU cell: two fused (B,H)@(H,3H) MXU matmuls, r/z/n gates sliced on lanes.
    # (For H >= 1024 split the gate math to shorten gi/gh live ranges.)
    gi = jnp.dot(x, wih_ref[...], preferred_element_type=f32) + bi_ref[...]
    gh = jnp.dot(h.astype(bf16), whh_ref[...], preferred_element_type=f32)
    r = jax.nn.sigmoid(gi[:, 0:H] + gh[:, 0:H])
    z = jax.nn.sigmoid(gi[:, H:2 * H] + gh[:, H:2 * H])
    n = jnp.tanh(gi[:, 2 * H:3 * H] + r * (gh[:, 2 * H:3 * H] + bhn_ref[...]))
    h_new = (1.0 - z) * n + z * h        # (B, H) f32  == rnn_output

    # Luong 'dot' attention on VPU/XLU (q=1 rows are not worth MXU push/drain).
    enc = enc_ref[...].astype(f32)                                   # (B, T, H)
    s = jnp.sum(h_new[:, None, :] * enc, axis=-1, keepdims=True)     # (B, T, 1)
    s = s - jnp.max(s, axis=1, keepdims=True)
    e = jnp.exp(s)
    attn = e * pl.reciprocal(jnp.sum(e, axis=1, keepdims=True), approx=True)
    ctx = jnp.sum(attn * enc, axis=1)                                # (B, H)

    # concat linear + tanh: single (B,2H)@(2H,H) MXU matmul.
    cat = jnp.concatenate([h_new, ctx], axis=1).astype(bf16)         # (B, 2H)
    cc = jnp.tanh(jnp.dot(cat, wc_ref[...], preferred_element_type=f32)
                  + bc_ref[...])                                     # (B, H)

    cc_ref[...] = cc.astype(bf16)
    hid_ref[...] = h_new


# --------------------------------------------------------------------------
# Kernel 2: output projection, vocab dimension streamed in lane-dense tiles.
# Stateless per tile -> grid axis is "parallel" (megacore on v7x).
# --------------------------------------------------------------------------
def vocab_proj_kernel(cc_ref, bo_ref, wo_ref, logits_ref):
    tv = wo_ref.shape[1]
    col = pl.multiple_of(pl.program_id(0) * tv, 128)
    logits_ref[...] = (
        jnp.dot(cc_ref[...], wo_ref[...], preferred_element_type=jnp.float32)
        + bo_ref[:, pl.ds(col, tv)]                     # bias is VMEM-resident
    )


# --------------------------------------------------------------------------
# One-time re-layouts (hoisted out of the per-token decode loop).
# --------------------------------------------------------------------------
def prepare_decoder_params(params, hidden_size):
    """Pre-transpose to (in,out), fuse GRU gate weights, pre-add r/z biases,
    cast MXU-facing weights to bf16 (halves weight DMA bytes).  Runs once."""
    H = hidden_size
    f32, bf16 = jnp.float32, jnp.bfloat16
    W_ih, W_hh = params["gru_w_ih"], params["gru_w_hh"]     # (3H, H), torch [r|z|n]
    b_ih, b_hh = params["gru_b_ih"], params["gru_b_hh"]     # (3H,)
    # r/z gates use b_ih + b_hh purely additively -> pre-sum; n keeps them split.
    b_i3 = jnp.concatenate([b_ih[:2 * H] + b_hh[:2 * H], b_ih[2 * H:]])[None, :]
    # Note: if the vocab has to be padded to a vocab_tile multiple, set the
    # padded entries of out_b to -inf here so they vanish in the softmax.
    return {
        "embedding": params["embedding"].astype(bf16),      # (V, H)
        "w_ih_t": W_ih.T.astype(bf16),                      # (H, 3H)
        "w_hh_t": W_hh.T.astype(bf16),                      # (H, 3H)
        "b_i3":   b_i3.astype(f32),                         # (1, 3H)
        "b_hn":   b_hh[2 * H:][None, :].astype(f32),        # (1, H)
        "wc_t":   params["concat_w"].T.astype(bf16),        # (2H, H)
        "bc":     params["concat_b"][None, :].astype(f32),  # (1, H)
        "wo_t":   params["out_w"].T.astype(bf16),           # (H, V)
        "bo":     params["out_b"][None, :].astype(f32),     # (1, V)
    }


def prepare_encoder_outputs(encoder_outputs):
    """(T,B,H) f32 -> (B,T,H) bf16.  Call ONCE per source sequence, outside the
    token-by-token decode loop (identical every decoded step)."""
    return jnp.transpose(encoder_outputs, (1, 0, 2)).astype(jnp.bfloat16)


# --------------------------------------------------------------------------
# Forward pass (one decoded token).
# --------------------------------------------------------------------------
def luong_attn_decoder_forward(input_step, last_hidden, enc_bf, prep,
                               *, hidden_size, vocab_tile=512):
    """input_step: (1,B) int32, last_hidden: (1,B,H) f32,
    enc_bf: (B,T,H) bf16 from prepare_encoder_outputs()."""
    H = hidden_size
    B = input_step.shape[1]
    T = enc_bf.shape[1]
    V = prep["wo_t"].shape[1]
    vocab_tile = min(vocab_tile, V)
    assert V % vocab_tile == 0 and vocab_tile % 128 == 0
    nv = V // vocab_tile

    # glue: embedding lookup (gather) + dropout(identity, eval mode)
    embedded = jnp.take(prep["embedding"], input_step[0], axis=0)   # (B,H) bf16
    h_prev = last_hidden[0].astype(jnp.float32)                     # (B,H) f32

    # --- VMEM budgets (explicit, double-buffering included, v7x-safe cap) ---
    state_bytes = (B * H * 2 + B * H * 4 + B * T * H * 2            # x, h, enc
                   + 2 * (H * 3 * H * 2) + 3 * H * 4 + H * 4        # GRU weights/biases
                   + 2 * H * H * 2 + H * 4                          # concat weights/bias
                   + B * H * 2 + B * H * 4)                         # outputs
    state_vmem = int(min(max(4 * state_bytes, 4 << 20), 64 << 20))
    proj_bytes = (2 * (H * vocab_tile * 2)       # streamed W_out tile (dbl-buffered)
                  + 2 * (B * vocab_tile * 4)     # streamed logits tile (dbl-buffered)
                  + 2 * (B * H * 2)              # resident cc
                  + 2 * (V * 4))                 # resident bias
    proj_vmem = int(min(max(2 * proj_bytes, 8 << 20), 64 << 20))

    # --- kernel 1: GRU + attention + concat (single block) ---
    cc, h_new = pl.pallas_call(
        decoder_state_kernel,
        out_shape=(jax.ShapeDtypeStruct((B, H), jnp.bfloat16),
                   jax.ShapeDtypeStruct((B, H), jnp.float32)),
        input_output_aliases={1: 1},                   # h_prev buffer -> hidden out
        compiler_params=pltpu.CompilerParams(vmem_limit_bytes=state_vmem),
    )(embedded, h_prev, enc_bf,
      prep["w_ih_t"], prep["w_hh_t"], prep["b_i3"], prep["b_hn"],
      prep["wc_t"], prep["bc"])

    # --- kernel 2: vocab projection, streamed W_out tiles, parallel grid ---
    logits = pl.pallas_call(
        vocab_proj_kernel,
        grid=(nv,),
        in_specs=[
            pl.BlockSpec((B, H), lambda j: (0, 0)),             # cc (resident)
            pl.BlockSpec((1, V), lambda j: (0, 0)),             # b_out (resident)
            pl.BlockSpec((H, vocab_tile), lambda j: (0, j)),    # W_out^T tile (streamed)
        ],
        out_specs=pl.BlockSpec((B, vocab_tile), lambda j: (0, j)),  # per-tile logits
        out_shape=jax.ShapeDtypeStruct((B, V), jnp.float32),
        compiler_params=pltpu.CompilerParams(
            dimension_semantics=("parallel",),       # vocab tiles independent -> megacore
            vmem_limit_bytes=proj_vmem),
    )(cc, prep["bo"], prep["wo_t"])

    # Exact final softmax in XLA (tiny at (B,V); avoids the serialized in-kernel
    # tail pass and keeps probabilities exact for sampling / NLL).
    output = jax.nn.softmax(logits, axis=1)
    return output, h_new[None, :, :]    # ((B,V), (n_layers=1, B, H))


# --------------------------------------------------------------------------
# Parameter init + pure-JAX reference (matches the PyTorch module semantics).
# --------------------------------------------------------------------------
def init_params(key, hidden_size, output_size):
    ks = jax.random.split(key, 10)
    s = 0.1
    return {
        "embedding": s * jax.random.normal(ks[0], (output_size, hidden_size), jnp.float32),
        "gru_w_ih":  s * jax.random.normal(ks[1], (3 * hidden_size, hidden_size), jnp.float32),
        "gru_w_hh":  s * jax.random.normal(ks[2], (3 * hidden_size, hidden_size), jnp.float32),
        "gru_b_ih":  s * jax.random.normal(ks[3], (3 * hidden_size,), jnp.float32),
        "gru_b_hh":  s * jax.random.normal(ks[4], (3 * hidden_size,), jnp.float32),
        "concat_w":  s * jax.random.normal(ks[5], (hidden_size, 2 * hidden_size), jnp.float32),
        "concat_b":  s * jax.random.normal(ks[6], (hidden_size,), jnp.float32),
        "out_w":     s * jax.random.normal(ks[7], (output_size, hidden_size), jnp.float32),
        "out_b":     s * jax.random.normal(ks[8], (output_size,), jnp.float32),
    }


def reference_forward(input_step, last_hidden, encoder_outputs, params, H):
    x = jnp.take(params["embedding"], input_step[0], axis=0)
    h = last_hidden[0]
    gi = x @ params["gru_w_ih"].T + params["gru_b_ih"]
    gh = h @ params["gru_w_hh"].T + params["gru_b_hh"]
    r = jax.nn.sigmoid(gi[:, :H] + gh[:, :H])
    z = jax.nn.sigmoid(gi[:, H:2 * H] + gh[:, H:2 * H])
    n = jnp.tanh(gi[:, 2 * H:] + r * gh[:, 2 * H:])
    h_new = (1.0 - z) * n + z * h
    scores = jnp.einsum('tbh,bh->bt', encoder_outputs, h_new)
    attn = jax.nn.softmax(scores, axis=1)
    ctx = jnp.einsum('bt,tbh->bh', attn, encoder_outputs)
    cc = jnp.tanh(jnp.concatenate([h_new, ctx], axis=1) @ params["concat_w"].T
                  + params["concat_b"])
    out = jax.nn.softmax(cc @ params["out_w"].T + params["out_b"], axis=1)
    return out, h_new[None]


if __name__ == "__main__":
    # Batch padded to 8 sublanes; hidden / vocab multiples of 128 (lane-dense).
    # (For production decode, grow B — projection arithmetic intensity ~ B.)
    B, H, T, V = 8, 128, 8, 1024
    VOCAB_TILE = 512
    key = jax.random.PRNGKey(0)
    kp, k1, k2, k3 = jax.random.split(key, 4)

    params = init_params(kp, H, V)
    input_step = jax.random.randint(k1, (1, B), 0, V, dtype=jnp.int32)
    last_hidden = jax.random.normal(k2, (1, B, H), jnp.float32)
    encoder_outputs = jax.random.normal(k3, (T, B, H), jnp.float32)

    prep = prepare_decoder_params(params, H)            # once per model
    enc_bf = prepare_encoder_outputs(encoder_outputs)   # once per source sequence

    fwd = jax.jit(luong_attn_decoder_forward,
                  static_argnames=("hidden_size", "vocab_tile"))
    output, hidden = fwd(input_step, last_hidden, enc_bf, prep,
                         hidden_size=H, vocab_tile=VOCAB_TILE)
    jax.block_until_ready((output, hidden))

    assert output.shape == (B, V) and hidden.shape == (1, B, H)
    # output rows are softmax distributions (exact final softmax)
    assert bool(jnp.all(jnp.abs(jnp.sum(output, axis=1) - 1.0) < 5e-3))

    ref_out, ref_hid = reference_forward(input_step, last_hidden,
                                         encoder_outputs, params, H)
    assert bool(jnp.max(jnp.abs(output - ref_out)) < 2e-2)
    assert bool(jnp.max(jnp.abs(hidden - ref_hid)) < 2e-2)
    print("KERNEL_OK")
</pallas_src>

<mosaic_0001>
module attributes {stable_mosaic.version = 11 : i64} {
  func.func @vocab_proj_kernel(%arg0: i32, %arg1: memref<8x128xbf16, #tpu.memory_space<vmem>>, %arg2: memref<1x1024xf32, #tpu.memory_space<vmem>>, %arg3: memref<128x512xbf16, #tpu.memory_space<vmem>>, %arg4: memref<8x512xf32, #tpu.memory_space<vmem>>) attributes {dimension_semantics = [#tpu.dimension_semantics<parallel>], iteration_bounds = array<i64: 2>, scalar_prefetch = 0 : i64, scratch_operands = 0 : i64, tpu.core_type = #tpu.core_type<tc>, window_params = [{pipeline_mode = #tpu.pipeline_mode<synchronous>, transform_indices = @transform_0, window_bounds = array<i64: 8, 128>}, {pipeline_mode = #tpu.pipeline_mode<synchronous>, transform_indices = @transform_1, window_bounds = array<i64: 1, 1024>}, {transform_indices = @transform_2, window_bounds = array<i64: 128, 512>}, {transform_indices = @transform_3, window_bounds = array<i64: 8, 512>}]} {
    %c512_i32 = arith.constant 512 : i32
    %0 = arith.muli %arg0, %c512_i32 : i32
    %1 = tpu.assume_multiple %0, 128 : i32
    %c0 = arith.constant 0 : index
    %c0_0 = arith.constant 0 : index
    %2 = vector.load %arg1[%c0, %c0_0] : memref<8x128xbf16, #tpu.memory_space<vmem>>, vector<8x128xbf16>
    %c0_1 = arith.constant 0 : index
    %c0_2 = arith.constant 0 : index
    %3 = vector.load %arg3[%c0_1, %c0_2] : memref<128x512xbf16, #tpu.memory_space<vmem>>, vector<128x512xbf16>
    %cst = arith.constant dense<0.000000e+00> : vector<8x512xf32>
    %4 = tpu.matmul %2, %3, %cst {dimension_numbers = #tpu.dot_dimension_numbers<[1], [0], [0], [1], [0, 0, 1, 1], [], []>} : vector<8x128xbf16>, vector<128x512xbf16>, vector<8x512xf32> -> vector<8x512xf32>
    %c0_3 = arith.constant 0 : index
    %5 = arith.index_cast %1 : i32 to index
    %6 = vector.load %arg2[%c0_3, %5] : memref<1x1024xf32, #tpu.memory_space<vmem>>, vector<1x512xf32>
    %7 = vector.broadcast %6 : vector<1x512xf32> to vector<8x512xf32>
    %8 = arith.addf %4, %7 : vector<8x512xf32>
    %c0_4 = arith.constant 0 : index
    %c0_5 = arith.constant 0 : index
    %9 = vector.load %arg4[%c0_4, %c0_5] : memref<8x512xf32, #tpu.memory_space<vmem>>, vector<8x512xf32>
    tpu.vector_store %arg4[%c0_4, %c0_5], %8 {strides = array<i32>} : memref<8x512xf32, #tpu.memory_space<vmem>>, vector<8x512xf32>,
    return
  }
  func.func @transform_0(%arg0: i32) -> (i32, i32) {
    %c0_i32 = arith.constant 0 : i32
    %c0_i32_0 = arith.constant 0 : i32
    %c0_i32_1 = arith.constant 0 : i32
    return %c0_i32, %c0_i32_0 : i32, i32
  }
  func.func @transform_1(%arg0: i32) -> (i32, i32) {
    %c0_i32 = arith.constant 0 : i32
    %c0_i32_0 = arith.constant 0 : i32
    %c0_i32_1 = arith.constant 0 : i32
    return %c0_i32, %c0_i32_0 : i32, i32
  }
  func.func @transform_2(%arg0: i32) -> (i32, i32) {
    %c0_i32 = arith.constant 0 : i32
    %c0_i32_0 = arith.constant 0 : i32
    return %c0_i32, %arg0 : i32, i32
  }
  func.func @transform_3(%arg0: i32) -> (i32, i32) {
    %c0_i32 = arith.constant 0 : i32
    %c0_i32_0 = arith.constant 0 : i32
    return %c0_i32, %arg0 : i32, i32
  }
}

module attributes {stable_mosaic.version = 11 : i64} {
  func.func @decoder_state_kernel(%arg0: memref<8x128xbf16, #tpu.memory_space<vmem>>, %arg1: memref<8x128xf32, #tpu.memory_space<vmem>>, %arg2: memref<8x8x128xbf16, #tpu.memory_space<vmem>>, %arg3: memref<128x384xbf16, #tpu.memory_space<vmem>>, %arg4: memref<128x384xbf16, #tpu.memory_space<vmem>>, %arg5: memref<1x384xf32, #tpu.memory_space<vmem>>, %arg6: memref<1x128xf32, #tpu.memory_space<vmem>>, %arg7: memref<256x128xbf16, #tpu.memory_space<vmem>>, %arg8: memref<1x128xf32, #tpu.memory_space<vmem>>, %arg9: memref<8x128xbf16, #tpu.memory_space<vmem>>, %arg10: memref<8x128xf32, #tpu.memory_space<vmem>>) attributes {dimension_semantics = [], scalar_prefetch = 0 : i64, scratch_operands = 0 : i64, tpu.core_type = #tpu.core_type<tc>} {
    %c0 = arith.constant 0 : index
    %c0_0 = arith.constant 0 : index
    %0 = vector.load %arg0[%c0, %c0_0] : memref<8x128xbf16, #tpu.memory_space<vmem>>, vector<8x128xbf16>
    %c0_1 = arith.constant 0 : index
    %c0_2 = arith.constant 0 : index
    %1 = vector.load %arg1[%c0_1, %c0_2] : memref<8x128xf32, #tpu.memory_space<vmem>>, vector<8x128xf32>
    %c0_3 = arith.constant 0 : index
    %c0_4 = arith.constant 0 : index
    %2 = vector.load %arg3[%c0_3, %c0_4] : memref<128x384xbf16, #tpu.memory_space<vmem>>, vector<128x384xbf16>
    %cst = arith.constant dense<0.000000e+00> : vector<8x384xf32>
    %3 = tpu.matmul %0, %2, %cst {dimension_numbers = #tpu.dot_dimension_numbers<[1], [0], [0], [1], [0, 0, 1, 1], [], []>} : vector<8x128xbf16>, vector<128x384xbf16>, vector<8x384xf32> -> vector<8x384xf32>
    %c0_5 = arith.constant 0 : index
    %c0_6 = arith.constant 0 : index
    %4 = vector.load %arg5[%c0_5, %c0_6] : memref<1x384xf32, #tpu.memory_space<vmem>>, vector<1x384xf32>
    %5 = vector.broadcast %4 : vector<1x384xf32> to vector<8x384xf32>
    %6 = arith.addf %3, %5 : vector<8x384xf32>
    %7 = arith.truncf %1 : vector<8x128xf32> to vector<8x128xbf16>
    %c0_7 = arith.constant 0 : index
    %c0_8 = arith.constant 0 : index
    %8 = vector.load %arg4[%c0_7, %c0_8] : memref<128x384xbf16, #tpu.memory_space<vmem>>, vector<128x384xbf16>
    %cst_9 = arith.constant dense<0.000000e+00> : vector<8x384xf32>
    %9 = tpu.matmul %7, %8, %cst_9 {dimension_numbers = #tpu.dot_dimension_numbers<[1], [0], [0], [1], [0, 0, 1, 1], [], []>} : vector<8x128xbf16>, vector<128x384xbf16>, vector<8x384xf32> -> vector<8x384xf32>
    %10 = vector.extract_strided_slice %6 {offsets = [0, 0], sizes = [8, 128], strides = [1, 1]} : vector<8x384xf32> to vector<8x128xf32>
    %11 = vector.extract_strided_slice %9 {offsets = [0, 0], sizes = [8, 128], strides = [1, 1]} : vector<8x384xf32> to vector<8x128xf32>
    %12 = arith.addf %10, %11 : vector<8x128xf32>
    %13 = arith.negf %12 : vector<8x128xf32>
    %14 = math.exp %13 : vector<8x128xf32>
    %cst_10 = arith.constant 1.000000e+00 : f32
    %15 = vector.broadcast %cst_10 : f32 to vector<8x128xf32>
    %16 = arith.addf %15, %14 : vector<8x128xf32>
    %17 = arith.divf %15, %16 : vector<8x128xf32>
    %18 = vector.extract_strided_slice %6 {offsets = [0, 128], sizes = [8, 128], strides = [1, 1]} : vector<8x384xf32> to vector<8x128xf32>
    %19 = vector.extract_strided_slice %9 {offsets = [0, 128], sizes = [8, 128], strides = [1, 1]} : vector<8x384xf32> to vector<8x128xf32>
    %20 = arith.addf %18, %19 : vector<8x128xf32>
    %21 = arith.negf %20 : vector<8x128xf32>
    %22 = math.exp %21 : vector<8x128xf32>
    %cst_11 = arith.constant 1.000000e+00 : f32
    %23 = vector.broadcast %cst_11 : f32 to vector<8x128xf32>
    %24 = arith.addf %23, %22 : vector<8x128xf32>
    %25 = arith.divf %23, %24 : vector<8x128xf32>
    %26 = vector.extract_strided_slice %6 {offsets = [0, 256], sizes = [8, 128], strides = [1, 1]} : vector<8x384xf32> to vector<8x128xf32>
    %27 = vector.extract_strided_slice %9 {offsets = [0, 256], sizes = [8, 128], strides = [1, 1]} : vector<8x384xf32> to vector<8x128xf32>
    %c0_12 = arith.constant 0 : index
    %c0_13 = arith.constant 0 : index
    %28 = vector.load %arg6[%c0_12, %c0_13] : memref<1x128xf32, #tpu.memory_space<vmem>>, vector<1x128xf32>
    %29 = vector.broadcast %28 : vector<1x128xf32> to vector<8x128xf32>
    %30 = arith.addf %27, %29 : vector<8x128xf32>
    %31 = arith.mulf %17, %30 : vector<8x128xf32>
    %32 = arith.addf %26, %31 : vector<8x128xf32>
    %33 = math.tanh %32 : vector<8x128xf32>
    %cst_14 = arith.constant 1.000000e+00 : f32
    %34 = vector.broadcast %cst_14 : f32 to vector<8x128xf32>
    %35 = arith.subf %34, %25 : vector<8x128xf32>
    %36 = arith.mulf %35, %33 : vector<8x128xf32>
    %37 = arith.mulf %25, %1 : vector<8x128xf32>
    %38 = arith.addf %36, %37 : vector<8x128xf32>
    %c0_15 = arith.constant 0 : index
    %c0_16 = arith.constant 0 : index
    %c0_17 = arith.constant 0 : index
    %39 = vector.load %arg2[%c0_15, %c0_16, %c0_17] : memref<8x8x128xbf16, #tpu.memory_space<vmem>>, vector<8x8x128xbf16>
    %40 = arith.extf %39 : vector<8x8x128xbf16> to vector<8x8x128xf32>
    %41 = vector.shape_cast %38 : vector<8x128xf32> to vector<8x1x128xf32>
    %42 = vector.broadcast %41 : vector<8x1x128xf32> to vector<8x8x128xf32>
    %43 = arith.mulf %42, %40 : vector<8x8x128xf32>
    %cst_18 = arith.constant dense<0.000000e+00> : vector<8x8xf32>
    %44 = vector.multi_reduction <add>, %43, %cst_18 [2] : vector<8x8x128xf32> to vector<8x8xf32>
    %45 = vector.shape_cast %44 : vector<8x8xf32> to vector<8x8x1xf32>
    %cst_19 = arith.constant dense<0xFF800000> : vector<8x1xf32>
    %46 = vector.multi_reduction <maximumf>, %45, %cst_19 [1] : vector<8x8x1xf32> to vector<8x1xf32>
    %47 = vector.shape_cast %46 : vector<8x1xf32> to vector<8x1x1xf32>
    %48 = vector.broadcast %47 : vector<8x1x1xf32> to vector<8x8x1xf32>
    %49 = arith.subf %45, %48 : vector<8x8x1xf32>
    %50 = math.exp %49 : vector<8x8x1xf32>
    %cst_20 = arith.constant dense<0.000000e+00> : vector<8x1xf32>
    %51 = vector.multi_reduction <add>, %50, %cst_20 [1] : vector<8x8x1xf32> to vector<8x1xf32>
    %52 = vector.shape_cast %51 : vector<8x1xf32> to vector<8x1x1xf32>
    %53 = tpu.reciprocal %52 {approx = true} : vector<8x1x1xf32> -> vector<8x1x1xf32>
    %54 = vector.broadcast %53 : vector<8x1x1xf32> to vector<8x8x1xf32>
    %55 = arith.mulf %50, %54 : vector<8x8x1xf32>
    %56 = vector.broadcast %55 : vector<8x8x1xf32> to vector<8x8x128xf32>
    %57 = arith.mulf %56, %40 : vector<8x8x128xf32>
    %cst_21 = arith.constant dense<0.000000e+00> : vector<8x128xf32>
    %58 = vector.multi_reduction <add>, %57, %cst_21 [1] : vector<8x8x128xf32> to vector<8x128xf32>
    %59 = tpu.concatenate %38, %58 in 1 : vector<8x128xf32>, vector<8x128xf32> -> vector<8x256xf32>
    %60 = arith.truncf %59 : vector<8x256xf32> to vector<8x256xbf16>
    %c0_22 = arith.constant 0 : index
    %c0_23 = arith.constant 0 : index
    %61 = vector.load %arg7[%c0_22, %c0_23] : memref<256x128xbf16, #tpu.memory_space<vmem>>, vector<256x128xbf16>
    %cst_24 = arith.constant dense<0.000000e+00> : vector<8x128xf32>
    %62 = tpu.matmul %60, %61, %cst_24 {dimension_numbers = #tpu.dot_dimension_numbers<[1], [0], [0], [1], [0, 0, 1, 1], [], []>} : vector<8x256xbf16>, vector<256x128xbf16>, vector<8x128xf32> -> vector<8x128xf32>
    %c0_25 = arith.constant 0 : index
    %c0_26 = arith.constant 0 : index
    %63 = vector.load %arg8[%c0_25, %c0_26] : memref<1x128xf32, #tpu.memory_space<vmem>>, vector<1x128xf32>
    %64 = vector.broadcast %63 : vector<1x128xf32> to vector<8x128xf32>
    %65 = arith.addf %62, %64 : vector<8x128xf32>
    %66 = math.tanh %65 : vector<8x128xf32>
    %67 = arith.truncf %66 : vector<8x128xf32> to vector<8x128xbf16>
    %c0_27 = arith.constant 0 : index
    %c0_28 = arith.constant 0 : index
    %68 = vector.load %arg9[%c0_27, %c0_28] : memref<8x128xbf16, #tpu.memory_space<vmem>>, vector<8x128xbf16>
    tpu.vector_store %arg9[%c0_27, %c0_28], %67 {strides = array<i32>} : memref<8x128xbf16, #tpu.memory_space<vmem>>, vector<8x128xbf16>,
    %c0_29 = arith.constant 0 : index
    %c0_30 = arith.constant 0 : index
    %69 = vector.load %arg10[%c0_29, %c0_30] : memref<8x128xf32, #tpu.memory_space<vmem>>, vector<8x128xf32>
    tpu.vector_store %arg10[%c0_29, %c0_30], %38 {strides = array<i32>} : memref<8x128xf32, #tpu.memory_space<vmem>>, vector<8x128xf32>,
    return
  }
}

</mosaic_0001>

<llo_original>
// kernel: luong_attn_decoder_forward.3
$region0: #{luong_attn_decoder_forward.3}
  #allocation0 [shape = 'u32[]', space=smem, size = 0x4, offset = 0x4, fixed_abs, tag = 'smem constant byte address 0x4 - core index']
  #allocation1 [shape = 'u32[144,128]{1,0:T(1,128)}', space=vmem, size = 0x12000, scoped, tag = 'internal scratch']
  %s0 = inlined_call_operand.vmem [shape: bf16[8,128], index: 0, kind: input, shape index: {}]
  %s1 = inlined_call_operand.vmem [shape: f32[1,1024], index: 1, kind: input, shape index: {}]
  %s2 = inlined_call_operand.vmem [shape: bf16[128,1024], index: 2, kind: input, shape index: {}]
  %s3 = inlined_call_operand.vmem [shape: f32[8,1024], index: 3, kind: output, shape index: {}]
  %s4 = sld [smem:[#allocation0]]
  $region68: #{luong_attn_decoder_forward.3} parent=0
    _
  %s6 = ssub.s32 1, %s4
  %s7 = scalar_select 0, %s6, %s4
  $region1: #{luong_attn_decoder_forward.3} parent=0
    #allocation2 [shape = 'u8[262144]{0}', space=vmem, size = 0x40000, scoped, tag = 'input window, operand 2']
    loop: start=0, step=1, limit=4
    $region2: #{luong_attn_decoder_forward.3} parent=1 // loop_pre_header
      _
    $region3: #{luong_attn_decoder_forward.3} parent=1 // loop_header
      %s9 = sphi 0, %s13
      %p10 = scmp.ge.s32.totalorder %s9, 4
      %s17 = sphi 0, %s17
      %s19 = sphi 0, %s17
      %s20 = sphi 0, %s19
      %s34 = sphi 0, %s20
      %s38 = sphi 0, %s38
      %s40 = sphi 0, %s38
      %s41 = sphi 0, %s40
      %s55 = sphi 0, %s41
      %s61 = sphi 0, %s63
      %s64 = sphi 0, %s61
      %s65 = sphi 0, %s64
      %s81 = sphi 0, %s65
      %s87 = sphi 0, %s89
      %s90 = sphi 0, %s87
      %s91 = sphi 0, %s90
      %s107 = sphi 0, %s91
    $region4: #{luong_attn_decoder_forward.3} parent=1 // loop_header_branch
      %12 = sbr.rel (%p10) target = $region8
    $region5: #{luong_attn_decoder_forward.3} parent=1 // loop_body
      %s14 = ssub.s32 %s9, 1
      %s15 = ssub.s32 %s9, 2
      %s16 = sadd.s32 %s9, 1
      %s18 = sadd.s32 %s17, 1
      %p21 = scmp.eq.s32.totalorder %s9, 1
      %p22 = scmp.ne.s32.totalorder %s17, %s19
      %p23 = scmp.eq.s32.totalorder %s9, 0
      %p24 = por %p22, %p23
      %p25 = scmp.ne.s32.totalorder %s17, %s19
      %p26 = scmp.eq.s32.totalorder %s14, 1
      %p27 = por %p25, %p26
      %p28 = scmp.ne.s32.totalorder %s19, %s20
      %p29 = scmp.eq.s32.totalorder %s14, 0
      %p30 = por %p28, %p29
      %p31 = scmp.ne.s32.totalorder %s19, %s20
      %p32 = scmp.eq.s32.totalorder %s15, 1
      %p33 = por %p31, %p32
      %p35 = scmp.ne.s32.totalorder %s20, %s34
      %p36 = scmp.eq.s32.totalorder %s15, 0
      %p37 = por %p35, %p36
      %s39 = sadd.s32 %s38, 1
      %p42 = scmp.eq.s32.totalorder %s9, 1
      %p43 = scmp.ne.s32.totalorder %s38, %s40
      %p44 = scmp.eq.s32.totalorder %s9, 0
      %p45 = por %p43, %p44
      %p46 = scmp.ne.s32.totalorder %s38, %s40
      %p47 = scmp.eq.s32.totalorder %s14, 1
      %p48 = por %p46, %p47
      %p49 = scmp.ne.s32.totalorder %s40, %s41
      %p50 = scmp.eq.s32.totalorder %s14, 0
      %p51 = por %p49, %p50
      %p52 = scmp.ne.s32.totalorder %s40, %s41
      %p53 = scmp.eq.s32.totalorder %s15, 1
      %p54 = por %p52, %p53
      %p56 = scmp.ne.s32.totalorder %s41, %s55
      %p57 = scmp.eq.s32.totalorder %s15, 0
      %p58 = por %p56, %p57
      %s59 = ssub.s32 %s9, %s16
      %p60 = scmp.eq.s32.totalorder %s59, 0
      %s62 = sadd.s32 %s61, 1
      %s63 = scalar_select %p60, %s61, %s62
      %p66 = pneg %p60
      %p67 = scmp.eq.s32.totalorder %s9, 1
      %p68 = por %p66, %p67
      %p69 = scmp.ne.s32.totalorder %s61, %s64
      %p70 = scmp.eq.s32.totalorder %s9, 0
      %p71 = por %p69, %p70
      %p72 = scmp.ne.s32.totalorder %s61, %s64
      %p73 = scmp.eq.s32.totalorder %s14, 1
      %p74 = por %p72, %p73
      %p75 = scmp.ne.s32.totalorder %s64, %s65
      %p76 = scmp.eq.s32.totalorder %s14, 0
      %p77 = por %p75, %p76
      %p78 = scmp.ne.s32.totalorder %s64, %s65
      %p79 = scmp.eq.s32.totalorder %s15, 1
      %p80 = por %p78, %p79
      %p82 = scmp.ne.s32.totalorder %s65, %s81
      %p83 = scmp.eq.s32.totalorder %s15, 0
      %p84 = por %p82, %p83
      %s85 = ssub.s32 %s9, %s16
      %p86 = scmp.eq.s32.totalorder %s85, 0
      %s88 = sadd.s32 %s87, 1
      %s89 = scalar_select %p86, %s87, %s88
      %p92 = pneg %p86
      %p93 = scmp.eq.s32.totalorder %s9, 1
      %p94 = por %p92, %p93
      %p95 = scmp.ne.s32.totalorder %s87, %s90
      %p96 = scmp.eq.s32.totalorder %s9, 0
      %p97 = por %p95, %p96
      %p98 = scmp.ne.s32.totalorder %s87, %s90
      %p99 = scmp.eq.s32.totalorder %s14, 1
      %p100 = por %p98, %p99
      %p101 = scmp.ne.s32.totalorder %s90, %s91
      %p102 = scmp.eq.s32.totalorder %s14, 0
      %p103 = por %p101, %p102
      %p104 = scmp.ne.s32.totalorder %s90, %s91
      %p105 = scmp.eq.s32.totalorder %s15, 1
      %p106 = por %p104, %p105
      %p108 = scmp.ne.s32.totalorder %s91, %s107
      %p109 = scmp.eq.s32.totalorder %s15, 0
      %p110 = por %p108, %p109
      %p111 = scmp.le.s32.totalorder 1, %s9
      %p112 = scmp.lt.s32.totalorder %s9, 3
      %p113 = pnand %p111, %p112
      %p114 = pneg %p113
      // Predicated region
      $region9: #{luong_attn_decoder_forward.3} parent=5 // pred_check
        _
      $region10: #{luong_attn_decoder_forward.3} parent=5 // pred_check_branch
        %116 = sbr.rel (%p113) target = $region12
      $region11: #{luong_attn_decoder_forward.3} parent=5 // pred_region
        %s117 = ssub.s32 %s9, 1
        // Predicated region
        $region13: #{luong_attn_decoder_forward.3} parent=11 // pred_check
          %p118 = pneg %p30
        $region14: #{luong_attn_decoder_forward.3} parent=11 // pred_check_branch
          %120 = sbr.rel (%p118) target = $region16
        $region15: #{luong_attn_decoder_forward.3} parent=11 // pred_region
          _
        $region16: #{luong_attn_decoder_forward.3} parent=11 // pred_fallthru
          _
        // Predicated region
        $region17: #{luong_attn_decoder_forward.3} parent=11 // pred_check
          %p121 = pneg %p51
        $region18: #{luong_attn_decoder_forward.3} parent=11 // pred_check_branch
          %123 = sbr.rel (%p121) target = $region20
        $region19: #{luong_attn_decoder_forward.3} parent=11 // pred_region
          _
        $region20: #{luong_attn_decoder_forward.3} parent=11 // pred_fallthru
          _
      $region12: #{luong_attn_decoder_forward.3} parent=5 // pred_fallthru
        _
      %p124 = scmp.lt.s32.totalorder %s9, 2
      // Predicated region
      $region21: #{luong_attn_decoder_forward.3} parent=5 // pred_check
        %p125 = pneg %p124
      $region22: #{luong_attn_decoder_forward.3} parent=5 // pred_check_branch
        %127 = sbr.rel (%p125) target = $region24
      $region23: #{luong_attn_decoder_forward.3} parent=5 // pred_region
        // Predicated region
        $region25: #{luong_attn_decoder_forward.3} parent=23 // pred_check
          %p128 = pneg %p71
        $region26: #{luong_attn_decoder_forward.3} parent=23 // pred_check_branch
          %130 = sbr.rel (%p128) target = $region28
        $region27: #{luong_attn_decoder_forward.3} parent=23 // pred_region
          %s131 = sand.u32 %s61, 1
          %s132 = sand.u32 %s61, 1
          %s133 = smul.addr %s132, 256
          %s134 = scalar_lea.vmem [#allocation2], %s133
          %s135 = smul.u32 4, %s9
          %s136 = smul.addr %s135, 4
          %s137 = scalar_lea.vmem %s2, %s136
          // Predicated region
          $region29: #{luong_attn_decoder_forward.3} parent=27 // pred_check
            _
          $region30: #{luong_attn_decoder_forward.3} parent=27 // pred_check_branch
            %139 = sbr.rel (0) target = $region32
          $region31: #{luong_attn_decoder_forward.3} parent=27 // pred_region
            // Predicated region
            $region33: #{luong_attn_decoder_forward.3} parent=31 // pred_check
              _
            $region34: #{luong_attn_decoder_forward.3} parent=31 // pred_check_branch
              %141 = sbr.rel (0) target = $region36
            $region35: #{luong_attn_decoder_forward.3} parent=31 // pred_region
              loop: start=0, step=1, limit=1
              $region37: #{luong_attn_decoder_forward.3} parent=35 // loop_pre_header
                _
              $region38: #{luong_attn_decoder_forward.3} parent=35 // loop_header
                %s143 = sphi 0, %s147
                %p144 = scmp.ge.s32.totalorder %s143, 1
                %s148 = sphi %s137, %s137
                %s149 = sphi %s134, %s134
              $region39: #{luong_attn_decoder_forward.3} parent=35 // loop_header_branch
                %146 = sbr.rel (%p144) target = $region43
              $region40: #{luong_attn_decoder_forward.3} parent=35 // loop_body
                %v150 = vld [vmem:[%s148] sm:$0xff]
                %151 = vst [vmem:[%s149] sm:$0xff] %v150
                %v152 = vld [vmem:[%s148 + $0x8] sm:$0xff]
                %153 = vst [vmem:[%s149 + $0x8] sm:$0xff] %v152
                %v154 = vld [vmem:[%s148 + $0x20] sm:$0xff]
                %155 = vst [vmem:[%s149 + $0x10] sm:$0xff] %v154
                %v156 = vld [vmem:[%s148 + $0x28] sm:$0xff]
                %157 = vst [vmem:[%s149 + $0x18] sm:$0xff] %v156
                %v158 = vld [vmem:[%s148 + $0x40] sm:$0xff]
                %159 = vst [vmem:[%s149 + $0x20] sm:$0xff] %v158
                %v160 = vld [vmem:[%s148 + $0x48] sm:$0xff]
                %161 = vst [vmem:[%s149 + $0x28] sm:$0xff] %v160
                %v162 = vld [vmem:[%s148 + $0x60] sm:$0xff]
                %163 = vst [vmem:[%s149 + $0x30] sm:$0xff] %v162
                %v164 = vld [vmem:[%s148 + $0x68] sm:$0xff]
                %165 = vst [vmem:[%s149 + $0x38] sm:$0xff] %v164
                %v166 = vld [vmem:[%s148 + $0x80] sm:$0xff]
                %167 = vst [vmem:[%s149 + $0x40] sm:$0xff] %v166
                %v168 = vld [vmem:[%s148 + $0x88] sm:$0xff]
                %169 = vst [vmem:[%s149 + $0x48] sm:$0xff] %v168
                %v170 = vld [vmem:[%s148 + $0xa0] sm:$0xff]
                %171 = vst [vmem:[%s149 + $0x50] sm:$0xff] %v170
                %v172 = vld [vmem:[%s148 + $0xa8] sm:$0xff]
                %173 = vst [vmem:[%s149 + $0x58] sm:$0xff] %v172
                %v174 = vld [vmem:[%s148 + $0xc0] sm:$0xff]
                %175 = vst [vmem:[%s149 + $0x60] sm:$0xff] %v174
                %v176 = vld [vmem:[%s148 + $0xc8] sm:$0xff]
                %177 = vst [vmem:[%s149 + $0x68] sm:$0xff] %v176
                %v178 = vld [vmem:[%s148 + $0xe0] sm:$0xff]
                %179 = vst [vmem:[%s149 + $0x70] sm:$0xff] %v178
                %v180 = vld [vmem:[%s148 + $0xe8] sm:$0xff]
                %181 = vst [vmem:[%s149 + $0x78] sm:$0xff] %v180
                %v182 = vld [vmem:[%s148 + $0x100] sm:$0xff]
                %183 = vst [vmem:[%s149 + $0x80] sm:$0xff] %v182
                %v184 = vld [vmem:[%s148 + $0x108] sm:$0xff]
                %185 = vst [vmem:[%s149 + $0x88] sm:$0xff] %v184
                %v186 = vld [vmem:[%s148 + $0x120] sm:$0xff]
                %187 = vst [vmem:[%s149 + $0x90] sm:$0xff] %v186
                %v188 = vld [vmem:[%s148 + $0x128] sm:$0xff]
                %189 = vst [vmem:[%s149 + $0x98] sm:$0xff] %v188
                %v190 = vld [vmem:[%s148 + $0x140] sm:$0xff]
                %191 = vst [vmem:[%s149 + $0xa0] sm:$0xff] %v190
                %v192 = vld [vmem:[%s148 + $0x148] sm:$0xff]
                %193 = vst [vmem:[%s149 + $0xa8] sm:$0xff] %v192
                %v194 = vld [vmem:[%s148 + $0x160] sm:$0xff]
                %195 = vst [vmem:[%s149 + $0xb0] sm:$0xff] %v194
                %v196 = vld [vmem:[%s148 + $0x168] sm:$0xff]
                %197 = vst [vmem:[%s149 + $0xb8] sm:$0xff] %v196
                %v198 = vld [vmem:[%s148 + $0x180] sm:$0xff]
                %199 = vst [vmem:[%s149 + $0xc0] sm:$0xff] %v198
                %v200 = vld [vmem:[%s148 + $0x188] sm:$0xff]
                %201 = vst [vmem:[%s149 + $0xc8] sm:$0xff] %v200
                %v202 = vld [vmem:[%s148 + $0x1a0] sm:$0xff]
                %203 = vst [vmem:[%s149 + $0xd0] sm:$0xff] %v202
                %v204 = vld [vmem:[%s148 + $0x1a8] sm:$0xff]
                %205 = vst [vmem:[%s149 + $0xd8] sm:$0xff] %v204
                %v206 = vld [vmem:[%s148 + $0x1c0] sm:$0xff]
                %207 = vst [vmem:[%s149 + $0xe0] sm:$0xff] %v206
                %v208 = vld [vmem:[%s148 + $0x1c8] sm:$0xff]
                %209 = vst [vmem:[%s149 + $0xe8] sm:$0xff] %v208
                %v210 = vld [vmem:[%s148 + $0x1e0] sm:$0xff]
                %211 = vst [vmem:[%s149 + $0xf0] sm:$0xff] %v210
                %v212 = vld [vmem:[%s148 + $0x1e8] sm:$0xff]
                %213 = vst [vmem:[%s149 + $0xf8] sm:$0xff] %v212
              $region41: #{luong_attn_decoder_forward.3} parent=35 // loop_footer
                %s147 = sadd.s32 1, %s143
              $region42: #{luong_attn_decoder_forward.3} parent=35 // loop_footer_branch
                %142 = sbr.rel target = $region38
              $region43: #{luong_attn_decoder_forward.3} parent=35 // loop_exit
                _
            $region36: #{luong_attn_decoder_forward.3} parent=31 // pred_fallthru
              _
            // Predicated region
            $region44: #{luong_attn_decoder_forward.3} parent=31 // pred_check
              _
            $region45: #{luong_attn_decoder_forward.3} parent=31 // pred_check_branch
              %215 = sbr.rel target = $region47
            $region46: #{luong_attn_decoder_forward.3} parent=31 // pred_region
              _
            $region47: #{luong_attn_decoder_forward.3} parent=31 // pred_fallthru
              _
          $region32: #{luong_attn_decoder_forward.3} parent=27 // pred_fallthru
            _
          %216 = vnop
        $region28: #{luong_attn_decoder_forward.3} parent=23 // pred_fallthru
          _
      $region24: #{luong_attn_decoder_forward.3} parent=5 // pred_fallthru
        _
      %p217 = scmp.le.s32.totalorder 1, %s9
      %p218 = scmp.lt.s32.totalorder %s9, 3
      %p219 = pnand %p217, %p218
      %p220 = pneg %p219
      // Predicated region
      $region48: #{luong_attn_decoder_forward.3} parent=5 // pred_check
        _
      $region49: #{luong_attn_decoder_forward.3} parent=5 // pred_check_branch
        %222 = sbr.rel (%p219) target = $region51
      $region50: #{luong_attn_decoder_forward.3} parent=5 // pred_region
        %s223 = ssub.s32 %s9, 1
        %s224 = sand.u32 %s64, 1
        %s225 = sand.u32 %s64, 1
        %s226 = smul.addr %s225, 256
        %s227 = scalar_lea.vmem [#allocation2], %s226
        // Predicated region
        $region52: #{luong_attn_decoder_forward.3} parent=50 // pred_check
          %p228 = pneg %p77
        $region53: #{luong_attn_decoder_forward.3} parent=50 // pred_check_branch
          %230 = sbr.rel (%p228) target = $region55
        $region54: #{luong_attn_decoder_forward.3} parent=50 // pred_region
          _
        $region55: #{luong_attn_decoder_forward.3} parent=50 // pred_fallthru
          _
        %p231 = pneg %p30
        %p232 = pneg %p27
        %p233 = pneg %p51
        %p234 = pneg %p48
        %s235 = sand.u32 %s64, 1
        %s236 = sand.u32 %s64, 1
        %s237 = smul.addr %s236, 256
        %s238 = scalar_lea.vmem [#allocation2], %s237
        %p239 = pneg %p77
        %p240 = pneg %p74
        %p241 = pneg %p103
        %p242 = pneg %p100
        %s243 = smul.u32 4, %s14
        %p244 = scmp.lt.s32.totalorder %s243, 7
        %s245 = scalar_select %p244, %s243, 7
        %s246 = smul.addr %s245, 8
        %s247 = scalar_lea.vmem %s3, %s246
        %s248 = smul.u32 4, %s14
        %s249 = smul.u32 4, %s14
        %p250 = scmp.lt.s32.totalorder %s249, 7
        %s251 = scalar_select %p250, %s249, 7
        %s252 = smul.addr %s251, 8
        %s253 = scalar_lea.vmem %s3, %s252
        %s254 = smul.u32 4, %s14
        %s256 = smul.u32 %s14, 512
        %v257 = vld [vmem:[%s0] sm:$0xf]
        %v258 = vld [vmem:[%s227] sm:$0xff]
        %v259 = vld [vmem:[%s227 + $0x8] sm:$0xff]
        %v260 = vld [vmem:[%s227 + $0x10] sm:$0xff]
        %v261 = vld [vmem:[%s227 + $0x18] sm:$0xff]
        %v262 = vld [vmem:[%s227 + $0x20] sm:$0xff]
        %v263 = vld [vmem:[%s227 + $0x28] sm:$0xff]
        %v264 = vld [vmem:[%s227 + $0x30] sm:$0xff]
        %v265 = vld [vmem:[%s227 + $0x38] sm:$0xff]
        %v266 = vld [vmem:[%s227 + $0x40] sm:$0xff]
        %v267 = vld [vmem:[%s227 + $0x48] sm:$0xff]
        %v268 = vld [vmem:[%s227 + $0x50] sm:$0xff]
        %v269 = vld [vmem:[%s227 + $0x58] sm:$0xff]
        %v270 = vld [vmem:[%s227 + $0x60] sm:$0xff]
        %v271 = vld [vmem:[%s227 + $0x68] sm:$0xff]
        %v272 = vld [vmem:[%s227 + $0x70] sm:$0xff]
        %v273 = vld [vmem:[%s227 + $0x78] sm:$0xff]
        %v274 = vld [vmem:[%s227 + $0x80] sm:$0xff]
        %v275 = vld [vmem:[%s227 + $0x88] sm:$0xff]
        %v276 = vld [vmem:[%s227 + $0x90] sm:$0xff]
        %v277 = vld [vmem:[%s227 + $0x98] sm:$0xff]
        %v278 = vld [vmem:[%s227 + $0xa0] sm:$0xff]
        %v279 = vld [vmem:[%s227 + $0xa8] sm:$0xff]
        %v280 = vld [vmem:[%s227 + $0xb0] sm:$0xff]
        %v281 = vld [vmem:[%s227 + $0xb8] sm:$0xff]
        %v282 = vld [vmem:[%s227 + $0xc0] sm:$0xff]
        %v283 = vld [vmem:[%s227 + $0xc8] sm:$0xff]
        %v284 = vld [vmem:[%s227 + $0xd0] sm:$0xff]
        %v285 = vld [vmem:[%s227 + $0xd8] sm:$0xff]
        %v286 = vld [vmem:[%s227 + $0xe0] sm:$0xff]
        %v287 = vld [vmem:[%s227 + $0xe8] sm:$0xff]
        %v288 = vld [vmem:[%s227 + $0xf0] sm:$0xff]
        %v289 = vld [vmem:[%s227 + $0xf8] sm:$0xff]
        %s290 = sshra.s32 %s256, 7
        %s291 = sand.u32 %s256, 127
        %s292 = scalar_lea.vmem %s1, %s290
        %v293 = vld [vmem:[%s292] sm:$0xf]
        %v295 = vlaneseq
        %v296 = vshrl.u32 %v295, 7
        %v297 = vsub.s32 0, %v296
        %v298 = vrot.slane %v293, %v297
        %v299 = vlaneseq
        %v300 = vshrl.u32 %v299, 7
        %v301 = vsub.s32 1, %v300
        %v302 = vrot.slane %v293, %v301
        %v303 = vlaneseq
        %v304 = vshrl.u32 %v303, 7
        %v305 = vsub.s32 2, %v304
        %v306 = vrot.slane %v293, %v305
        %v307 = vlaneseq
        %v308 = vshrl.u32 %v307, 7
        %v309 = vsub.s32 3, %v308
        %v310 = vrot.slane %v293, %v309
        %v347 = vunpack.c.l.b16 %v258
        %v348 = vunpack.c.h.b16 %v258
        %v349 = vunpack.c.l.b16 %v259
        %v350 = vunpack.c.h.b16 %v259
        %v351 = vunpack.c.l.b16 %v260
        %v352 = vunpack.c.h.b16 %v260
        %v353 = vunpack.c.l.b16 %v261
        %v354 = vunpack.c.h.b16 %v261
        %v355 = vunpack.c.l.b16 %v262
        %v356 = vunpack.c.h.b16 %v262
        %v357 = vunpack.c.l.b16 %v263
        %v358 = vunpack.c.h.b16 %v263
        %v359 = vunpack.c.l.b16 %v264
        %v360 = vunpack.c.h.b16 %v264
        %v361 = vunpack.c.l.b16 %v265
        %v362 = vunpack.c.h.b16 %v265
        %v363 = vunpack.c.l.b16 %v266
        %v364 = vunpack.c.h.b16 %v266
        %v365 = vunpack.c.l.b16 %v267
        %v366 = vunpack.c.h.b16 %v267
        %v367 = vunpack.c.l.b16 %v268
        %v368 = vunpack.c.h.b16 %v268
        %v369 = vunpack.c.l.b16 %v269
        %v370 = vunpack.c.h.b16 %v269
        %v371 = vunpack.c.l.b16 %v270
        %v372 = vunpack.c.h.b16 %v270
        %v373 = vunpack.c.l.b16 %v271
        %v374 = vunpack.c.h.b16 %v271
        %v375 = vunpack.c.l.b16 %v272
        %v376 = vunpack.c.h.b16 %v272
        %v377 = vunpack.c.l.b16 %v273
        %v378 = vunpack.c.h.b16 %v273
        %v379 = vunpack.c.l.b16 %v274
        %v380 = vunpack.c.h.b16 %v274
        %v381 = vunpack.c.l.b16 %v275
        %v382 = vunpack.c.h.b16 %v275
        %v383 = vunpack.c.l.b16 %v276
        %v384 = vunpack.c.h.b16 %v276
        %v385 = vunpack.c.l.b16 %v277
        %v386 = vunpack.c.h.b16 %v277
        %v387 = vunpack.c.l.b16 %v278
        %v388 = vunpack.c.h.b16 %v278
        %v389 = vunpack.c.l.b16 %v279
        %v390 = vunpack.c.h.b16 %v279
        %v391 = vunpack.c.l.b16 %v280
        %v392 = vunpack.c.h.b16 %v280
        %v393 = vunpack.c.l.b16 %v281
        %v394 = vunpack.c.h.b16 %v281
        %v395 = vunpack.c.l.b16 %v282
        %v396 = vunpack.c.h.b16 %v282
        %v397 = vunpack.c.l.b16 %v283
        %v398 = vunpack.c.h.b16 %v283
        %v399 = vunpack.c.l.b16 %v284
        %v400 = vunpack.c.h.b16 %v284
        %v401 = vunpack.c.l.b16 %v285
        %v402 = vunpack.c.h.b16 %v285
        %v403 = vunpack.c.l.b16 %v286
        %v404 = vunpack.c.h.b16 %v286
        %v405 = vunpack.c.l.b16 %v287
        %v406 = vunpack.c.h.b16 %v287
        %v407 = vunpack.c.l.b16 %v288
        %v408 = vunpack.c.h.b16 %v288
        %v409 = vunpack.c.l.b16 %v289
        %v410 = vunpack.c.h.b16 %v289
        %v411 = vpack.c.b16 %v351, %v347
        %v412 = vpack.c.b16 %v352, %v348
        %v413 = vpack.c.b16 %v353, %v349
        %v414 = vpack.c.b16 %v354, %v350
        %v415 = vpack.c.b16 %v359, %v355
        %v416 = vpack.c.b16 %v360, %v356
        %v417 = vpack.c.b16 %v361, %v357
        %v418 = vpack.c.b16 %v362, %v358
        %v419 = vpack.c.b16 %v367, %v363
        %v420 = vpack.c.b16 %v368, %v364
        %v421 = vpack.c.b16 %v369, %v365
        %v422 = vpack.c.b16 %v370, %v366
        %v423 = vpack.c.b16 %v375, %v371
        %v424 = vpack.c.b16 %v376, %v372
        %v425 = vpack.c.b16 %v377, %v373
        %v426 = vpack.c.b16 %v378, %v374
        %v427 = vpack.c.b16 %v383, %v379
        %v428 = vpack.c.b16 %v384, %v380
        %v429 = vpack.c.b16 %v385, %v381
        %v430 = vpack.c.b16 %v386, %v382
        %v431 = vpack.c.b16 %v391, %v387
        %v432 = vpack.c.b16 %v392, %v388
        %v433 = vpack.c.b16 %v393, %v389
        %v434 = vpack.c.b16 %v394, %v390
        %v435 = vpack.c.b16 %v399, %v395
        %v436 = vpack.c.b16 %v400, %v396
        %v437 = vpack.c.b16 %v401, %v397
        %v438 = vpack.c.b16 %v402, %v398
        %v439 = vpack.c.b16 %v407, %v403
        %v440 = vpack.c.b16 %v408, %v404
        %v441 = vpack.c.b16 %v409, %v405
        %v442 = vpack.c.b16 %v410, %v406
        %475 = vmatprep.subr.bf16.mxu0 %v440
        %476 = vmatpush1.bf16.msra.mxu0 %v439
        %477 = vmatprep.subr.bf16.mxu0 %v436
        %478 = vmatpush1.bf16.msra.mxu0 %v435
        %479 = vmatprep.subr.bf16.mxu0 %v432
        %480 = vmatpush1.bf16.msra.mxu0 %v431
        %481 = vmatprep.subr.bf16.mxu0 %v428
        %482 = vmatpush1.bf16.msra.mxu0 %v427
        %483 = vmatprep.subr.bf16.mxu0 %v424
        %484 = vmatpush1.bf16.msra.mxu0 %v423
        %485 = vmatprep.subr.bf16.mxu0 %v420
        %486 = vmatpush1.bf16.msra.mxu0 %v419
        %487 = vmatprep.subr.bf16.mxu0 %v416
        %488 = vmatpush1.bf16.msra.mxu0 %v415
        %489 = vmatprep.subr.bf16.mxu0 %v412
        %490 = vmatpush1.bf16.msra.mxu0 %v411
        %491 = vmatprep.subr.bf16.mxu0 0
        %492 = vmatpush2.bf16.msra.mxu0 0
        %493 = vmatprep.subr.bf16.mxu0 0
        %494 = vmatpush2.bf16.msra.mxu0 0
        %495 = vmatprep.subr.bf16.mxu0 0
        %496 = vmatpush2.bf16.msra.mxu0 0
        %497 = vmatprep.subr.bf16.mxu0 0
        %498 = vmatpush2.bf16.msra.mxu0 0
        %499 = vmatprep.subr.bf16.mxu0 0
        %500 = vmatpush2.bf16.msra.mxu0 0
        %501 = vmatprep.subr.bf16.mxu0 0
        %502 = vmatpush2.bf16.msra.mxu0 0
        %503 = vmatprep.subr.bf16.mxu0 0
        %504 = vmatpush2.bf16.msra.mxu0 0
        %505 = vmatprep.subr.bf16.mxu0 0
        %506 = vmatpush2.bf16.msra.mxu0 0
        %507 = vmatprep.mubr.bf16.mxu0 0
        %508 = vmatmul.mubr.bf16.gmra.mxu0 %v257
        %v509 = vpop.f32.mrf.mxu0
        %v510 = vadd.f32 %v298, %v509
        %v511 = vpop.f32.mrf.mxu0
        %v512 = vadd.f32 %v302, %v511
        %v513 = vpop.f32.mrf.mxu0
        %v514 = vpop.f32.mrf.mxu0
        %515 = vdwg.mxu0
        %516 = vmatprep.subr.bf16.mxu0 %v442
        %517 = vmatpush1.bf16.msra.mxu0 %v441
        %518 = vmatprep.subr.bf16.mxu0 %v438
        %519 = vmatpush1.bf16.msra.mxu0 %v437
        %520 = vmatprep.subr.bf16.mxu0 %v434
        %521 = vmatpush1.bf16.msra.mxu0 %v433
        %522 = vmatprep.subr.bf16.mxu0 %v430
        %523 = vmatpush1.bf16.msra.mxu0 %v429
        %524 = vmatprep.subr.bf16.mxu0 %v426
        %525 = vmatpush1.bf16.msra.mxu0 %v425
        %526 = vmatprep.subr.bf16.mxu0 %v422
        %527 = vmatpush1.bf16.msra.mxu0 %v421
        %528 = vmatprep.subr.bf16.mxu0 %v418
        %529 = vmatpush1.bf16.msra.mxu0 %v417
        %530 = vmatprep.subr.bf16.mxu0 %v414
        %531 = vmatpush1.bf16.msra.mxu0 %v413
        %532 = vmatprep.subr.bf16.mxu0 0
        %533 = vmatpush2.bf16.msra.mxu0 0
        %534 = vmatprep.subr.bf16.mxu0 0
        %535 = vmatpush2.bf16.msra.mxu0 0
        %536 = vmatprep.subr.bf16.mxu0 0
        %537 = vmatpush2.bf16.msra.mxu0 0
        %538 = vmatprep.subr.bf16.mxu0 0
        %539 = vmatpush2.bf16.msra.mxu0 0
        %540 = vmatprep.subr.bf16.mxu0 0
        %541 = vmatpush2.bf16.msra.mxu0 0
        %542 = vmatprep.subr.bf16.mxu0 0
        %543 = vmatpush2.bf16.msra.mxu0 0
        %544 = vmatprep.subr.bf16.mxu0 0
        %545 = vmatpush2.bf16.msra.mxu0 0
        %546 = vmatprep.subr.bf16.mxu0 0
        %547 = vmatpush2.bf16.msra.mxu0 0
        %548 = vmatprep.mubr.bf16.mxu0 0
        %549 = vmatmul.mubr.bf16.gmra.mxu0 %v257
        %v550 = vpop.f32.mrf.mxu0
        %v551 = vadd.f32 %v306, %v550
        %v552 = vpop.f32.mrf.mxu0
        %v553 = vadd.f32 %v310, %v552
        %v554 = vpop.f32.mrf.mxu0
        %v555 = vpop.f32.mrf.mxu0
        %556 = vdwg.mxu0
        %557 = vst [vmem:[%s253] sm:$0xff] %v510
        %558 = vst [vmem:[%s253 + $0x8] sm:$0xff] %v512
        %559 = vst [vmem:[%s253 + $0x10] sm:$0xff] %v551
        %560 = vst [vmem:[%s253 + $0x18] sm:$0xff] %v553
        %s561 = smul.u32 4, %s14
        %p562 = scmp.lt.s32.totalorder %s561, 7
        %s563 = scalar_select %p562, %s561, 7
        %s564 = smul.addr %s563, 8
        %s565 = scalar_lea.vmem %s3, %s564
        // Predicated region
        $region56: #{luong_attn_decoder_forward.3} parent=50 // pred_check
          %p566 = pneg %p100
        $region57: #{luong_attn_decoder_forward.3} parent=50 // pred_check_branch
          %568 = sbr.rel (%p566) target = $region59
        $region58: #{luong_attn_decoder_forward.3} parent=50 // pred_region
          %s569 = smul.u32 4, %s14
        $region59: #{luong_attn_decoder_forward.3} parent=50 // pred_fallthru
          _
      $region51: #{luong_attn_decoder_forward.3} parent=5 // pred_fallthru
        _
      %p570 = scmp.le.s32.totalorder 2, %s9
      // Predicated region
      $region60: #{luong_attn_decoder_forward.3} parent=5 // pred_check
        %p571 = pneg %p570
      $region61: #{luong_attn_decoder_forward.3} parent=5 // pred_check_branch
        %573 = sbr.rel (%p571) target = $region63
      $region62: #{luong_attn_decoder_forward.3} parent=5 // pred_region
        %s574 = ssub.s32 %s9, 2
        // Predicated region
        $region64: #{luong_attn_decoder_forward.3} parent=62 // pred_check
          %p575 = pneg %p106
        $region65: #{luong_attn_decoder_forward.3} parent=62 // pred_check_branch
          %577 = sbr.rel (%p575) target = $region67
        $region66: #{luong_attn_decoder_forward.3} parent=62 // pred_region
          %s578 = smul.u32 4, %s15
          %p579 = scmp.lt.s32.totalorder %s578, 7
          %s580 = scalar_select %p579, %s578, 7
          %s581 = smul.addr %s580, 8
          %s582 = scalar_lea.vmem %s3, %s581
        $region67: #{luong_attn_decoder_forward.3} parent=62 // pred_fallthru
          _
      $region63: #{luong_attn_decoder_forward.3} parent=5 // pred_fallthru
        _
    $region6: #{luong_attn_decoder_forward.3} parent=1 // loop_footer
      %s13 = sadd.s32 1, %s9
    $region7: #{luong_attn_decoder_forward.3} parent=1 // loop_footer_branch
      %8 = sbr.rel target = $region3
    $region8: #{luong_attn_decoder_forward.3} parent=1 // loop_exit
      _

// kernel: luong_attn_decoder_forward.2
$region0: #{luong_attn_decoder_forward.2}
  #allocation0 [shape = 'u32[]', space=smem, size = 0x4, offset = 0x4, fixed_abs, tag = 'smem constant byte address 0x4 - core index']
  #allocation1 [shape = 'u32[144,128]{1,0:T(1,128)}', space=vmem, size = 0x12000, scoped, tag = 'internal scratch']
  %s0 = inlined_call_operand.vmem [shape: bf16[8,128], index: 0, kind: input, shape index: {}]
  %s1 = inlined_call_operand.vmem [shape: f32[8,128], index: 1, kind: input, shape index: {}, may-alias: {1,10}]
  %s2 = inlined_call_operand.hbm [shape: bf16[8,8,128], index: 2, kind: input, shape index: {}]
  %s3 = inlined_call_operand.hbm [shape: bf16[128,384], index: 3, kind: input, shape index: {}]
  %s4 = inlined_call_operand.hbm [shape: bf16[128,384], index: 4, kind: input, shape index: {}]
  %s5 = inlined_call_operand.hbm [shape: f32[1,384], index: 5, kind: input, shape index: {}]
  %s6 = inlined_call_operand.hbm [shape: f32[1,128], index: 6, kind: input, shape index: {}]
  %s7 = inlined_call_operand.hbm [shape: bf16[256,128], index: 7, kind: input, shape index: {}]
  %s8 = inlined_call_operand.hbm [shape: f32[1,128], index: 8, kind: input, shape index: {}]
  %s9 = inlined_call_operand.vmem [shape: bf16[8,128], index: 9, kind: output, shape index: {0}]
  %s10 = inlined_call_operand.vmem [shape: f32[8,128], index: 10, kind: output, shape index: {1}, may-alias: {1,10}]
  %11 = xla_tuple %s9, %s10
  %s12 = sld [smem:[#allocation0]]
  $region82: #{luong_attn_decoder_forward.2} parent=0
    _
  %s14 = ssub.s32 1, %s12
  %s15 = scalar_select 0, %s14, %s12
  $region1: #{luong_attn_decoder_forward.2} parent=0
    #allocation2 [shape = 'u8[16384]{0}', space=vmem, size = 0x4000, scoped, tag = 'input window, operand 2, single buffered']
    #allocation3 [shape = 's32[1]{0}', space=sflag, size = 0x4, scoped, tag = 'scoped memory for luong_attn_decoder_forward.2']
    #allocation4 [shape = 'u8[98304]{0}', space=vmem, size = 0x18000, scoped, tag = 'input window, operand 3, single buffered']
    #allocation5 [shape = 's32[1]{0}', space=sflag, size = 0x4, scoped, tag = 'scoped memory for luong_attn_decoder_forward.2']
    #allocation6 [shape = 'u8[98304]{0}', space=vmem, size = 0x18000, scoped, tag = 'input window, operand 4, single buffered']
    #allocation7 [shape = 'u8[1536]{0}', space=vmem, size = 0x800, scoped, tag = 'input window, operand 5, single buffered']
    #allocation8 [shape = 's32[1]{0}', space=sflag, size = 0x4, scoped, tag = 'scoped memory for luong_attn_decoder_forward.2']
    #allocation9 [shape = 'u8[512]{0}', space=vmem, size = 0x400, scoped, tag = 'input window, operand 6, single buffered']
    #allocation10 [shape = 'u8[65536]{0}', space=vmem, size = 0x10000, scoped, tag = 'input window, operand 7, single buffered']
    #allocation11 [shape = 's32[1]{0}', space=sflag, size = 0x4, scoped, tag = 'scoped memory for luong_attn_decoder_forward.2']
    #allocation12 [shape = 'u8[512]{0}', space=vmem, size = 0x400, scoped, tag = 'input window, operand 8, single buffered']
    %16 = vsyncpa [#allocation3], 0
    %17 = vsyncpa [#allocation5], 0
    %18 = vsyncpa [#allocation8], 0
    %19 = vsyncpa [#allocation11], 0
    // Predicated region
    $region2: #{luong_attn_decoder_forward.2} parent=1 // pred_check
      _
    $region3: #{luong_attn_decoder_forward.2} parent=1 // pred_check_branch
      %21 = sbr.rel (0) target = $region5
    $region4: #{luong_attn_decoder_forward.2} parent=1 // pred_region
      _
    $region5: #{luong_attn_decoder_forward.2} parent=1 // pred_fallthru
      _
    // Predicated region
    $region6: #{luong_attn_decoder_forward.2} parent=1 // pred_check
      _
    $region7: #{luong_attn_decoder_forward.2} parent=1 // pred_check_branch
      %23 = sbr.rel (0) target = $region9
    $region8: #{luong_attn_decoder_forward.2} parent=1 // pred_region
      _
    $region9: #{luong_attn_decoder_forward.2} parent=1 // pred_fallthru
      _
    // Predicated region
    $region10: #{luong_attn_decoder_forward.2} parent=1 // pred_check
      _
    $region11: #{luong_attn_decoder_forward.2} parent=1 // pred_check_branch
      %25 = sbr.rel (0) target = $region13
    $region12: #{luong_attn_decoder_forward.2} parent=1 // pred_region
      %s27 = ssub.s32 512, 512
      %28 = vsyncadd [#allocation3], %s27
      %s29 = sshll.u32 [#allocation2], 4
      %s30 = int_to_ptr.vmem [resolvable:$true] %s29
      %35 = dma.hbm_to_vmem [thread:$0]  %s2, 512, %s30, [#allocation3], 64, 64, 4
    $region13: #{luong_attn_decoder_forward.2} parent=1 // pred_fallthru
      _
    // Predicated region
    $region14: #{luong_attn_decoder_forward.2} parent=1 // pred_check
      _
    $region15: #{luong_attn_decoder_forward.2} parent=1 // pred_check_branch
      %37 = sbr.rel (0) target = $region17
    $region16: #{luong_attn_decoder_forward.2} parent=1 // pred_region
      %s39 = ssub.s32 3072, 3072
      %40 = vsyncadd [#allocation5], %s39
      %s41 = sshll.u32 [#allocation4], 4
      %s42 = int_to_ptr.vmem [resolvable:$true] %s41
      %47 = dma.hbm_to_vmem [thread:$0]  %s3, 3072, %s42, [#allocation5], 192, 192, 12
    $region17: #{luong_attn_decoder_forward.2} parent=1 // pred_fallthru
      _
    // Predicated region
    $region18: #{luong_attn_decoder_forward.2} parent=1 // pred_check
      _
    $region19: #{luong_attn_decoder_forward.2} parent=1 // pred_check_branch
      %49 = sbr.rel (0) target = $region21
    $region20: #{luong_attn_decoder_forward.2} parent=1 // pred_region
      %s51 = ssub.s32 3072, 3072
      %52 = vsyncadd [#allocation5], %s51
      %s53 = sshll.u32 [#allocation6], 4
      %s54 = int_to_ptr.vmem [resolvable:$true] %s53
      %59 = dma.hbm_to_vmem [thread:$0]  %s4, 3072, %s54, [#allocation5], 192, 192, 12
    $region21: #{luong_attn_decoder_forward.2} parent=1 // pred_fallthru
      _
    // Predicated region
    $region22: #{luong_attn_decoder_forward.2} parent=1 // pred_check
      _
    $region23: #{luong_attn_decoder_forward.2} parent=1 // pred_check_branch
      %61 = sbr.rel (0) target = $region25
    $region24: #{luong_attn_decoder_forward.2} parent=1 // pred_region
      %s63 = ssub.s32 48, 48
      %64 = vsyncadd [#allocation8], %s63
      %s66 = sshll.u32 [#allocation7], 4
      %s67 = int_to_ptr.vmem [resolvable:$true] %s66
      %69 = dma.hbm_to_vmem [thread:$0]  %s5, 48, %s67, [#allocation8]
    $region25: #{luong_attn_decoder_forward.2} parent=1 // pred_fallthru
      _
    // Predicated region
    $region26: #{luong_attn_decoder_forward.2} parent=1 // pred_check
      _
    $region27: #{luong_attn_decoder_forward.2} parent=1 // pred_check_branch
      %71 = sbr.rel (0) target = $region29
    $region28: #{luong_attn_decoder_forward.2} parent=1 // pred_region
      %s73 = ssub.s32 16, 16
      %74 = vsyncadd [#allocation8], %s73
      %s76 = sshll.u32 [#allocation9], 4
      %s77 = int_to_ptr.vmem [resolvable:$true] %s76
      %79 = dma.hbm_to_vmem [thread:$0]  %s6, 16, %s77, [#allocation8]
    $region29: #{luong_attn_decoder_forward.2} parent=1 // pred_fallthru
      _
    // Predicated region
    $region30: #{luong_attn_decoder_forward.2} parent=1 // pred_check
      _
    $region31: #{luong_attn_decoder_forward.2} parent=1 // pred_check_branch
      %81 = sbr.rel (0) target = $region33
    $region32: #{luong_attn_decoder_forward.2} parent=1 // pred_region
      %s83 = ssub.s32 2048, 2048
      %84 = vsyncadd [#allocation11], %s83
      %s85 = sshll.u32 [#allocation10], 4
      %s86 = int_to_ptr.vmem [resolvable:$true] %s85
      %91 = dma.hbm_to_vmem [thread:$0]  %s7, 2048, %s86, [#allocation11], 64, 64, 4
    $region33: #{luong_attn_decoder_forward.2} parent=1 // pred_fallthru
      _
    // Predicated region
    $region34: #{luong_attn_decoder_forward.2} parent=1 // pred_check
      _
    $region35: #{luong_attn_decoder_forward.2} parent=1 // pred_check_branch
      %93 = sbr.rel (0) target = $region37
    $region36: #{luong_attn_decoder_forward.2} parent=1 // pred_region
      %s95 = ssub.s32 16, 16
      %96 = vsyncadd [#allocation11], %s95
      %s98 = sshll.u32 [#allocation12], 4
      %s99 = int_to_ptr.vmem [resolvable:$true] %s98
      %101 = dma.hbm_to_vmem [thread:$0]  %s8, 16, %s99, [#allocation11]
    $region37: #{luong_attn_decoder_forward.2} parent=1 // pred_fallthru
      _
    // Predicated region
    $region38: #{luong_attn_decoder_forward.2} parent=1 // pred_check
      _
    $region39: #{luong_attn_decoder_forward.2} parent=1 // pred_check_branch
      %103 = sbr.rel (0) target = $region41
    $region40: #{luong_attn_decoder_forward.2} parent=1 // pred_region
      %104 = dma.done [#allocation3], 512
    $region41: #{luong_attn_decoder_forward.2} parent=1 // pred_fallthru
      _
    // Predicated region
    $region42: #{luong_attn_decoder_forward.2} parent=1 // pred_check
      _
    $region43: #{luong_attn_decoder_forward.2} parent=1 // pred_check_branch
      %106 = sbr.rel (0) target = $region45
    $region44: #{luong_attn_decoder_forward.2} parent=1 // pred_region
      %107 = dma.done [#allocation5], 3072
    $region45: #{luong_attn_decoder_forward.2} parent=1 // pred_fallthru
      _
    // Predicated region
    $region46: #{luong_attn_decoder_forward.2} parent=1 // pred_check
      _
    $region47: #{luong_attn_decoder_forward.2} parent=1 // pred_check_branch
      %109 = sbr.rel (0) target = $region49
    $region48: #{luong_attn_decoder_forward.2} parent=1 // pred_region
      %110 = dma.done [#allocation5], 3072
    $region49: #{luong_attn_decoder_forward.2} parent=1 // pred_fallthru
      _
    // Predicated region
    $region50: #{luong_attn_decoder_forward.2} parent=1 // pred_check
      _
    $region51: #{luong_attn_decoder_forward.2} parent=1 // pred_check_branch
      %112 = sbr.rel (0) target = $region53
    $region52: #{luong_attn_decoder_forward.2} parent=1 // pred_region
      %113 = dma.done [#allocation8], 48
    $region53: #{luong_attn_decoder_forward.2} parent=1 // pred_fallthru
      _
    // Predicated region
    $region54: #{luong_attn_decoder_forward.2} parent=1 // pred_check
      _
    $region55: #{luong_attn_decoder_forward.2} parent=1 // pred_check_branch
      %115 = sbr.rel (0) target = $region57
    $region56: #{luong_attn_decoder_forward.2} parent=1 // pred_region
      %116 = dma.done [#allocation8], 16
    $region57: #{luong_attn_decoder_forward.2} parent=1 // pred_fallthru
      _
    // Predicated region
    $region58: #{luong_attn_decoder_forward.2} parent=1 // pred_check
      _
    $region59: #{luong_attn_decoder_forward.2} parent=1 // pred_check_branch
      %118 = sbr.rel (0) target = $region61
    $region60: #{luong_attn_decoder_forward.2} parent=1 // pred_region
      %119 = dma.done [#allocation11], 2048
    $region61: #{luong_attn_decoder_forward.2} parent=1 // pred_fallthru
      _
    // Predicated region
    $region62: #{luong_attn_decoder_forward.2} parent=1 // pred_check
      _
    $region63: #{luong_attn_decoder_forward.2} parent=1 // pred_check_branch
      %121 = sbr.rel (0) target = $region65
    $region64: #{luong_attn_decoder_forward.2} parent=1 // pred_region
      %122 = dma.done [#allocation11], 16
    $region65: #{luong_attn_decoder_forward.2} parent=1 // pred_fallthru
      _
    %v124 = vld [vmem:[%s0] sm:$0xf]
    %v125 = vld [vmem:[%s1] sm:$0xff]
    %v126 = vld [vmem:[#allocation4] sm:$0xff]
    %v127 = vld [vmem:[#allocation4 + $0x8] sm:$0xf]
    %v128 = vld [vmem:[#allocation4 + $0xc] sm:$0xff]
    %v129 = vld [vmem:[#allocation4 + $0x14] sm:$0xf]
    %v130 = vld [vmem:[#allocation4 + $0x18] sm:$0xff]
    %v131 = vld [vmem:[#allocation4 + $0x20] sm:$0xf]
    %v132 = vld [vmem:[#allocation4 + $0x24] sm:$0xff]
    %v133 = vld [vmem:[#allocation4 + $0x2c] sm:$0xf]
    %v134 = vld [vmem:[#allocation4 + $0x30] sm:$0xff]
    %v135 = vld [vmem:[#allocation4 + $0x38] sm:$0xf]
    %v136 = vld [vmem:[#allocation4 + $0x3c] sm:$0xff]
    %v137 = vld [vmem:[#allocation4 + $0x44] sm:$0xf]
    %v138 = vld [vmem:[#allocation4 + $0x48] sm:$0xff]
    %v139 = vld [vmem:[#allocation4 + $0x50] sm:$0xf]
    %v140 = vld [vmem:[#allocation4 + $0x54] sm:$0xff]
    %v141 = vld [vmem:[#allocation4 + $0x5c] sm:$0xf]
    %v142 = vld [vmem:[#allocation4 + $0x60] sm:$0xff]
    %v143 = vld [vmem:[#allocation4 + $0x68] sm:$0xf]
    %v144 = vld [vmem:[#allocation4 + $0x6c] sm:$0xff]
    %v145 = vld [vmem:[#allocation4 + $0x74] sm:$0xf]
    %v146 = vld [vmem:[#allocation4 + $0x78] sm:$0xff]
    %v147 = vld [vmem:[#allocation4 + $0x80] sm:$0xf]
    %v148 = vld [vmem:[#allocation4 + $0x84] sm:$0xff]
    %v149 = vld [vmem:[#allocation4 + $0x8c] sm:$0xf]
    %v150 = vld [vmem:[#allocation4 + $0x90] sm:$0xff]
    %v151 = vld [vmem:[#allocation4 + $0x98] sm:$0xf]
    %v152 = vld [vmem:[#allocation4 + $0x9c] sm:$0xff]
    %v153 = vld [vmem:[#allocation4 + $0xa4] sm:$0xf]
    %v154 = vld [vmem:[#allocation4 + $0xa8] sm:$0xff]
    %v155 = vld [vmem:[#allocation4 + $0xb0] sm:$0xf]
    %v156 = vld [vmem:[#allocation4 + $0xb4] sm:$0xff]
    %v157 = vld [vmem:[#allocation4 + $0xbc] sm:$0xf]
    %v158 = vld [vmem:[#allocation7] sm:$0x7]
    %v160 = vlaneseq
    %v161 = vshrl.u32 %v160, 7
    %v162 = vsub.s32 0, %v161
    %v163 = vrot.slane %v158, %v162
    %v164 = vlaneseq
    %v165 = vshrl.u32 %v164, 7
    %v166 = vsub.s32 1, %v165
    %v167 = vrot.slane %v158, %v166
    %v168 = vlaneseq
    %v169 = vshrl.u32 %v168, 7
    %v170 = vsub.s32 2, %v169
    %v171 = vrot.slane %v158, %v170
    %v207 = vunpack.c.l.b16 %v126
    %v208 = vunpack.c.h.b16 %v126
    %v209 = vunpack.c.l.b16 %v127
    %v210 = vunpack.c.l.b16 %v128
    %v211 = vunpack.c.h.b16 %v128
    %v212 = vunpack.c.l.b16 %v129
    %v213 = vunpack.c.l.b16 %v130
    %v214 = vunpack.c.h.b16 %v130
    %v215 = vunpack.c.l.b16 %v131
    %v216 = vunpack.c.l.b16 %v132
    %v217 = vunpack.c.h.b16 %v132
    %v218 = vunpack.c.l.b16 %v133
    %v219 = vunpack.c.l.b16 %v134
    %v220 = vunpack.c.h.b16 %v134
    %v221 = vunpack.c.l.b16 %v135
    %v222 = vunpack.c.l.b16 %v136
    %v223 = vunpack.c.h.b16 %v136
    %v224 = vunpack.c.l.b16 %v137
    %v225 = vunpack.c.l.b16 %v138
    %v226 = vunpack.c.h.b16 %v138
    %v227 = vunpack.c.l.b16 %v139
    %v228 = vunpack.c.l.b16 %v140
    %v229 = vunpack.c.h.b16 %v140
    %v230 = vunpack.c.l.b16 %v141
    %v231 = vunpack.c.l.b16 %v142
    %v232 = vunpack.c.h.b16 %v142
    %v233 = vunpack.c.l.b16 %v143
    %v234 = vunpack.c.l.b16 %v144
    %v235 = vunpack.c.h.b16 %v144
    %v236 = vunpack.c.l.b16 %v145
    %v237 = vunpack.c.l.b16 %v146
    %v238 = vunpack.c.h.b16 %v146
    %v239 = vunpack.c.l.b16 %v147
    %v240 = vunpack.c.l.b16 %v148
    %v241 = vunpack.c.h.b16 %v148
    %v242 = vunpack.c.l.b16 %v149
    %v243 = vunpack.c.l.b16 %v150
    %v244 = vunpack.c.h.b16 %v150
    %v245 = vunpack.c.l.b16 %v151
    %v246 = vunpack.c.l.b16 %v152
    %v247 = vunpack.c.h.b16 %v152
    %v248 = vunpack.c.l.b16 %v153
    %v249 = vunpack.c.l.b16 %v154
    %v250 = vunpack.c.h.b16 %v154
    %v251 = vunpack.c.l.b16 %v155
    %v252 = vunpack.c.l.b16 %v156
    %v253 = vunpack.c.h.b16 %v156
    %v254 = vunpack.c.l.b16 %v157
    %v255 = vpack.c.b16 %v210, %v207
    %v256 = vpack.c.b16 %v211, %v208
    %v257 = vpack.c.b16 %v212, %v209
    %v258 = vpack.c.b16 %v216, %v213
    %v259 = vpack.c.b16 %v217, %v214
    %v260 = vpack.c.b16 %v218, %v215
    %v261 = vpack.c.b16 %v222, %v219
    %v262 = vpack.c.b16 %v223, %v220
    %v263 = vpack.c.b16 %v224, %v221
    %v264 = vpack.c.b16 %v228, %v225
    %v265 = vpack.c.b16 %v229, %v226
    %v266 = vpack.c.b16 %v230, %v227
    %v267 = vpack.c.b16 %v234, %v231
    %v268 = vpack.c.b16 %v235, %v232
    %v269 = vpack.c.b16 %v236, %v233
    %v270 = vpack.c.b16 %v240, %v237
    %v271 = vpack.c.b16 %v241, %v238
    %v272 = vpack.c.b16 %v242, %v239
    %v273 = vpack.c.b16 %v246, %v243
    %v274 = vpack.c.b16 %v247, %v244
    %v275 = vpack.c.b16 %v248, %v245
    %v276 = vpack.c.b16 %v252, %v249
    %v277 = vpack.c.b16 %v253, %v250
    %v278 = vpack.c.b16 %v254, %v251
    %303 = vmatprep.subr.bf16.mxu0 %v277
    %304 = vmatpush1.bf16.msra.mxu0 %v276
    %305 = vmatprep.subr.bf16.mxu0 %v274
    %306 = vmatpush1.bf16.msra.mxu0 %v273
    %307 = vmatprep.subr.bf16.mxu0 %v271
    %308 = vmatpush1.bf16.msra.mxu0 %v270
    %309 = vmatprep.subr.bf16.mxu0 %v268
    %310 = vmatpush1.bf16.msra.mxu0 %v267
    %311 = vmatprep.subr.bf16.mxu0 %v265
    %312 = vmatpush1.bf16.msra.mxu0 %v264
    %313 = vmatprep.subr.bf16.mxu0 %v262
    %314 = vmatpush1.bf16.msra.mxu0 %v261
    %315 = vmatprep.subr.bf16.mxu0 %v259
    %316 = vmatpush1.bf16.msra.mxu0 %v258
    %317 = vmatprep.subr.bf16.mxu0 %v256
    %318 = vmatpush1.bf16.msra.mxu0 %v255
    %319 = vmatprep.subr.bf16.mxu0 0
    %320 = vmatpush2.bf16.msra.mxu0 0
    %321 = vmatprep.subr.bf16.mxu0 0
    %322 = vmatpush2.bf16.msra.mxu0 0
    %323 = vmatprep.subr.bf16.mxu0 0
    %324 = vmatpush2.bf16.msra.mxu0 0
    %325 = vmatprep.subr.bf16.mxu0 0
    %326 = vmatpush2.bf16.msra.mxu0 0
    %327 = vmatprep.subr.bf16.mxu0 0
    %328 = vmatpush2.bf16.msra.mxu0 0
    %329 = vmatprep.subr.bf16.mxu0 0
    %330 = vmatpush2.bf16.msra.mxu0 0
    %331 = vmatprep.subr.bf16.mxu0 0
    %332 = vmatpush2.bf16.msra.mxu0 0
    %333 = vmatprep.subr.bf16.mxu0 0
    %334 = vmatpush2.bf16.msra.mxu0 0
    %335 = vmatprep.mubr.bf16.mxu0 0
    %336 = vmatmul.mubr.bf16.gmra.mxu0 %v124
    %v337 = vpop.f32.mrf.mxu0
    %v338 = vadd.f32 %v163, %v337
    %v339 = vpop.f32.mrf.mxu0
    %v340 = vadd.f32 %v167, %v339
    %v341 = vpop.f32.mrf.mxu0
    %v342 = vpop.f32.mrf.mxu0
    %343 = vdwg.mxu0
    %344 = vmatprep.subr.bf16.mxu0 0
    %345 = vmatpush1.bf16.msra.mxu0 %v278
    %346 = vmatprep.subr.bf16.mxu0 0
    %347 = vmatpush1.bf16.msra.mxu0 %v275
    %348 = vmatprep.subr.bf16.mxu0 0
    %349 = vmatpush1.bf16.msra.mxu0 %v272
    %350 = vmatprep.subr.bf16.mxu0 0
    %351 = vmatpush1.bf16.msra.mxu0 %v269
    %352 = vmatprep.subr.bf16.mxu0 0
    %353 = vmatpush1.bf16.msra.mxu0 %v266
    %354 = vmatprep.subr.bf16.mxu0 0
    %355 = vmatpush1.bf16.msra.mxu0 %v263
    %356 = vmatprep.subr.bf16.mxu0 0
    %357 = vmatpush1.bf16.msra.mxu0 %v260
    %358 = vmatprep.subr.bf16.mxu0 0
    %359 = vmatpush1.bf16.msra.mxu0 %v257
    %360 = vmatprep.subr.bf16.mxu0 0
    %361 = vmatpush2.bf16.msra.mxu0 0
    %362 = vmatprep.subr.bf16.mxu0 0
    %363 = vmatpush2.bf16.msra.mxu0 0
    %364 = vmatprep.subr.bf16.mxu0 0
    %365 = vmatpush2.bf16.msra.mxu0 0
    %366 = vmatprep.subr.bf16.mxu0 0
    %367 = vmatpush2.bf16.msra.mxu0 0
    %368 = vmatprep.subr.bf16.mxu0 0
    %369 = vmatpush2.bf16.msra.mxu0 0
    %370 = vmatprep.subr.bf16.mxu0 0
    %371 = vmatpush2.bf16.msra.mxu0 0
    %372 = vmatprep.subr.bf16.mxu0 0
    %373 = vmatpush2.bf16.msra.mxu0 0
    %374 = vmatprep.subr.bf16.mxu0 0
    %375 = vmatpush2.bf16.msra.mxu0 0
    %376 = vmatprep.mubr.bf16.mxu0 0
    %377 = vmatmul.mubr.bf16.gmra.mxu0 %v124
    %v378 = vpop.f32.mrf.mxu0
    %v379 = vadd.f32 %v171, %v378
    %v380 = vpop.f32.mrf.mxu0
    %v381 = vpop.f32.mrf.mxu0
    %v382 = vpop.f32.mrf.mxu0
    %383 = vdwg.mxu0
    %v384 = vpack.c.bf16 %v125, %v125
    %v385 = vld [vmem:[#allocation6] sm:$0xff]
    %v386 = vld [vmem:[#allocation6 + $0x8] sm:$0xf]
    %v387 = vld [vmem:[#allocation6 + $0xc] sm:$0xff]
    %v388 = vld [vmem:[#allocation6 + $0x14] sm:$0xf]
    %v389 = vld [vmem:[#allocation6 + $0x18] sm:$0xff]
    %v390 = vld [vmem:[#allocation6 + $0x20] sm:$0xf]
    %v391 = vld [vmem:[#allocation6 + $0x24] sm:$0xff]
    %v392 = vld [vmem:[#allocation6 + $0x2c] sm:$0xf]
    %v393 = vld [vmem:[#allocation6 + $0x30] sm:$0xff]
    %v394 = vld [vmem:[#allocation6 + $0x38] sm:$0xf]
    %v395 = vld [vmem:[#allocation6 + $0x3c] sm:$0xff]
    %v396 = vld [vmem:[#allocation6 + $0x44] sm:$0xf]
    %v397 = vld [vmem:[#allocation6 + $0x48] sm:$0xff]
    %v398 = vld [vmem:[#allocation6 + $0x50] sm:$0xf]
    %v399 = vld [vmem:[#allocation6 + $0x54] sm:$0xff]
    %v400 = vld [vmem:[#allocation6 + $0x5c] sm:$0xf]
    %v401 = vld [vmem:[#allocation6 + $0x60] sm:$0xff]
    %v402 = vld [vmem:[#allocation6 + $0x68] sm:$0xf]
    %v403 = vld [vmem:[#allocation6 + $0x6c] sm:$0xff]
    %v404 = vld [vmem:[#allocation6 + $0x74] sm:$0xf]
    %v405 = vld [vmem:[#allocation6 + $0x78] sm:$0xff]
    %v406 = vld [vmem:[#allocation6 + $0x80] sm:$0xf]
    %v407 = vld [vmem:[#allocation6 + $0x84] sm:$0xff]
    %v408 = vld [vmem:[#allocation6 + $0x8c] sm:$0xf]
    %v409 = vld [vmem:[#allocation6 + $0x90] sm:$0xff]
    %v410 = vld [vmem:[#allocation6 + $0x98] sm:$0xf]
    %v411 = vld [vmem:[#allocation6 + $0x9c] sm:$0xff]
    %v412 = vld [vmem:[#allocation6 + $0xa4] sm:$0xf]
    %v413 = vld [vmem:[#allocation6 + $0xa8] sm:$0xff]
    %v414 = vld [vmem:[#allocation6 + $0xb0] sm:$0xf]
    %v415 = vld [vmem:[#allocation6 + $0xb4] sm:$0xff]
    %v416 = vld [vmem:[#allocation6 + $0xbc] sm:$0xf]
    %v449 = vunpack.c.l.b16 %v385
    %v450 = vunpack.c.h.b16 %v385
    %v451 = vunpack.c.l.b16 %v386
    %v452 = vunpack.c.l.b16 %v387
    %v453 = vunpack.c.h.b16 %v387
    %v454 = vunpack.c.l.b16 %v388
    %v455 = vunpack.c.l.b16 %v389
    %v456 = vunpack.c.h.b16 %v389
    %v457 = vunpack.c.l.b16 %v390
    %v458 = vunpack.c.l.b16 %v391
    %v459 = vunpack.c.h.b16 %v391
    %v460 = vunpack.c.l.b16 %v392
    %v461 = vunpack.c.l.b16 %v393
    %v462 = vunpack.c.h.b16 %v393
    %v463 = vunpack.c.l.b16 %v394
    %v464 = vunpack.c.l.b16 %v395
    %v465 = vunpack.c.h.b16 %v395
    %v466 = vunpack.c.l.b16 %v396
    %v467 = vunpack.c.l.b16 %v397
    %v468 = vunpack.c.h.b16 %v397
    %v469 = vunpack.c.l.b16 %v398
    %v470 = vunpack.c.l.b16 %v399
    %v471 = vunpack.c.h.b16 %v399
    %v472 = vunpack.c.l.b16 %v400
    %v473 = vunpack.c.l.b16 %v401
    %v474 = vunpack.c.h.b16 %v401
    %v475 = vunpack.c.l.b16 %v402
    %v476 = vunpack.c.l.b16 %v403
    %v477 = vunpack.c.h.b16 %v403
    %v478 = vunpack.c.l.b16 %v404
    %v479 = vunpack.c.l.b16 %v405
    %v480 = vunpack.c.h.b16 %v405
    %v481 = vunpack.c.l.b16 %v406
    %v482 = vunpack.c.l.b16 %v407
    %v483 = vunpack.c.h.b16 %v407
    %v484 = vunpack.c.l.b16 %v408
    %v485 = vunpack.c.l.b16 %v409
    %v486 = vunpack.c.h.b16 %v409
    %v487 = vunpack.c.l.b16 %v410
    %v488 = vunpack.c.l.b16 %v411
    %v489 = vunpack.c.h.b16 %v411
    %v490 = vunpack.c.l.b16 %v412
    %v491 = vunpack.c.l.b16 %v413
    %v492 = vunpack.c.h.b16 %v413
    %v493 = vunpack.c.l.b16 %v414
    %v494 = vunpack.c.l.b16 %v415
    %v495 = vunpack.c.h.b16 %v415
    %v496 = vunpack.c.l.b16 %v416
    %v497 = vpack.c.b16 %v452, %v449
    %v498 = vpack.c.b16 %v453, %v450
    %v499 = vpack.c.b16 %v454, %v451
    %v500 = vpack.c.b16 %v458, %v455
    %v501 = vpack.c.b16 %v459, %v456
    %v502 = vpack.c.b16 %v460, %v457
    %v503 = vpack.c.b16 %v464, %v461
    %v504 = vpack.c.b16 %v465, %v462
    %v505 = vpack.c.b16 %v466, %v463
    %v506 = vpack.c.b16 %v470, %v467
    %v507 = vpack.c.b16 %v471, %v468
    %v508 = vpack.c.b16 %v472, %v469
    %v509 = vpack.c.b16 %v476, %v473
    %v510 = vpack.c.b16 %v477, %v474
    %v511 = vpack.c.b16 %v478, %v475
    %v512 = vpack.c.b16 %v482, %v479
    %v513 = vpack.c.b16 %v483, %v480
    %v514 = vpack.c.b16 %v484, %v481
    %v515 = vpack.c.b16 %v488, %v485
    %v516 = vpack.c.b16 %v489, %v486
    %v517 = vpack.c.b16 %v490, %v487
    %v518 = vpack.c.b16 %v494, %v491
    %v519 = vpack.c.b16 %v495, %v492
    %v520 = vpack.c.b16 %v496, %v493
    %545 = vmatprep.subr.bf16.mxu0 %v519
    %546 = vmatpush1.bf16.msra.mxu0 %v518
    %547 = vmatprep.subr.bf16.mxu0 %v516
    %548 = vmatpush1.bf16.msra.mxu0 %v515
    %549 = vmatprep.subr.bf16.mxu0 %v513
    %550 = vmatpush1.bf16.msra.mxu0 %v512
    %551 = vmatprep.subr.bf16.mxu0 %v510
    %552 = vmatpush1.bf16.msra.mxu0 %v509
    %553 = vmatprep.subr.bf16.mxu0 %v507
    %554 = vmatpush1.bf16.msra.mxu0 %v506
    %555 = vmatprep.subr.bf16.mxu0 %v504
    %556 = vmatpush1.bf16.msra.mxu0 %v503
    %557 = vmatprep.subr.bf16.mxu0 %v501
    %558 = vmatpush1.bf16.msra.mxu0 %v500
    %559 = vmatprep.subr.bf16.mxu0 %v498
    %560 = vmatpush1.bf16.msra.mxu0 %v497
    %561 = vmatprep.subr.bf16.mxu0 0
    %562 = vmatpush2.bf16.msra.mxu0 0
    %563 = vmatprep.subr.bf16.mxu0 0
    %564 = vmatpush2.bf16.msra.mxu0 0
    %565 = vmatprep.subr.bf16.mxu0 0
    %566 = vmatpush2.bf16.msra.mxu0 0
    %567 = vmatprep.subr.bf16.mxu0 0
    %568 = vmatpush2.bf16.msra.mxu0 0
    %569 = vmatprep.subr.bf16.mxu0 0
    %570 = vmatpush2.bf16.msra.mxu0 0
    %571 = vmatprep.subr.bf16.mxu0 0
    %572 = vmatpush2.bf16.msra.mxu0 0
    %573 = vmatprep.subr.bf16.mxu0 0
    %574 = vmatpush2.bf16.msra.mxu0 0
    %575 = vmatprep.subr.bf16.mxu0 0
    %576 = vmatpush2.bf16.msra.mxu0 0
    %577 = vmatprep.mubr.bf16.mxu0 0
    %578 = vmatmul.mubr.bf16.gmra.mxu0 %v384
    %v579 = vpop.f32.mrf.mxu0
    %v580 = vadd.f32 0.0, %v579
    %v581 = vpop.f32.mrf.mxu0
    %v582 = vadd.f32 0.0, %v581
    %v583 = vpop.f32.mrf.mxu0
    %v584 = vpop.f32.mrf.mxu0
    %585 = vdwg.mxu0
    %586 = vmatprep.subr.bf16.mxu0 0
    %587 = vmatpush1.bf16.msra.mxu0 %v520
    %588 = vmatprep.subr.bf16.mxu0 0
    %589 = vmatpush1.bf16.msra.mxu0 %v517
    %590 = vmatprep.subr.bf16.mxu0 0
    %591 = vmatpush1.bf16.msra.mxu0 %v514
    %592 = vmatprep.subr.bf16.mxu0 0
    %593 = vmatpush1.bf16.msra.mxu0 %v511
    %594 = vmatprep.subr.bf16.mxu0 0
    %595 = vmatpush1.bf16.msra.mxu0 %v508
    %596 = vmatprep.subr.bf16.mxu0 0
    %597 = vmatpush1.bf16.msra.mxu0 %v505
    %598 = vmatprep.subr.bf16.mxu0 0
    %599 = vmatpush1.bf16.msra.mxu0 %v502
    %600 = vmatprep.subr.bf16.mxu0 0
    %601 = vmatpush1.bf16.msra.mxu0 %v499
    %602 = vmatprep.subr.bf16.mxu0 0
    %603 = vmatpush2.bf16.msra.mxu0 0
    %604 = vmatprep.subr.bf16.mxu0 0
    %605 = vmatpush2.bf16.msra.mxu0 0
    %606 = vmatprep.subr.bf16.mxu0 0
    %607 = vmatpush2.bf16.msra.mxu0 0
    %608 = vmatprep.subr.bf16.mxu0 0
    %609 = vmatpush2.bf16.msra.mxu0 0
    %610 = vmatprep.subr.bf16.mxu0 0
    %611 = vmatpush2.bf16.msra.mxu0 0
    %612 = vmatprep.subr.bf16.mxu0 0
    %613 = vmatpush2.bf16.msra.mxu0 0
    %614 = vmatprep.subr.bf16.mxu0 0
    %615 = vmatpush2.bf16.msra.mxu0 0
    %616 = vmatprep.subr.bf16.mxu0 0
    %617 = vmatpush2.bf16.msra.mxu0 0
    %618 = vmatprep.mubr.bf16.mxu0 0
    %619 = vmatmul.mubr.bf16.gmra.mxu0 %v384
    %v620 = vpop.f32.mrf.mxu0
    %v621 = vadd.f32 0.0, %v620
    %v622 = vpop.f32.mrf.mxu0
    %v623 = vpop.f32.mrf.mxu0
    %v624 = vpop.f32.mrf.mxu0
    %625 = vdwg.mxu0
    %v626 = vadd.f32 %v338, %v580
    %v627 = vxor.u32 %v626, 2147483648
    %v628 = vmul.f32 %v627, 1.442695
    %v629 = vpow.pop %v628
    %v630 = vadd.f32 %v629, 1.0
    %v631 = vrcp.pop %v630
    %v632 = vmul.f32 1.0, %v631
    %v633 = vadd.f32 %v340, %v582
    %v634 = vxor.u32 %v633, 2147483648
    %v635 = vmul.f32 %v634, 1.442695
    %v636 = vpow.pop %v635
    %v637 = vadd.f32 %v636, 1.0
    %v638 = vrcp.pop %v637
    %v639 = vmul.f32 1.0, %v638
    %v640 = vld [vmem:[#allocation9] sm:$0x1]
    %v642 = vlaneseq
    %v643 = vshrl.u32 %v642, 7
    %v644 = vsub.s32 0, %v643
    %v645 = vrot.slane %v640, %v644
    %v647 = vadd.f32 %v621, %v645
    %v648 = vmul.f32 %v632, %v647
    %v649 = vadd.f32 %v379, %v648
    %v650 = vtanh.pop %v649
    %v651 = vsub.f32 1.0, %v639
    %v652 = vmul.f32 %v651, %v650
    %v653 = vmul.f32 %v639, %v125
    %v654 = vadd.f32 %v652, %v653
    %v655 = vld [vmem:[#allocation2] sm:$0xf]
    %v656 = vld [vmem:[#allocation2 + $0x4] sm:$0xf]
    %v657 = vld [vmem:[#allocation2 + $0x8] sm:$0xf]
    %v658 = vld [vmem:[#allocation2 + $0xc] sm:$0xf]
    %v659 = vld [vmem:[#allocation2 + $0x10] sm:$0xf]
    %v660 = vld [vmem:[#allocation2 + $0x14] sm:$0xf]
    %v661 = vld [vmem:[#allocation2 + $0x18] sm:$0xf]
    %v662 = vld [vmem:[#allocation2 + $0x1c] sm:$0xf]
    %v663 = vunpack.c.l.bf16 %v655
    %v664 = vunpack.c.l.bf16 %v656
    %v665 = vunpack.c.l.bf16 %v657
    %v666 = vunpack.c.l.bf16 %v658
    %v667 = vunpack.c.l.bf16 %v659
    %v668 = vunpack.c.l.bf16 %v660
    %v669 = vunpack.c.l.bf16 %v661
    %v670 = vunpack.c.l.bf16 %v662
    %v672 = vcombine.high %v654, %v654
    %v674 = vunpack.c.l.s4 1966171168
    %v675 = vunpack.c.0.s8 %v674
    %v676 = vlaneseq
    %v677 = vshrl.u32 %v676, 7
    %v678 = vsub.s32 %v675, %v677
    %v679 = vrot.slane %v654, %v678
    %v681 = vunpack.c.l.s4 1966171168
    %v682 = vunpack.c.0.s8 %v681
    %v683 = vlaneseq
    %v684 = vshrl.u32 %v683, 7
    %v685 = vsub.s32 %v682, %v684
    %v686 = vrot.slane %v672, %v685
    %v687 = vcombine.high %v679, %v679
    %v688 = vcombine.high %v686, %v686
    %v690 = vunpack.c.l.s4 1966171168
    %v691 = vunpack.c.0.s8 %v690
    %v692 = vlaneseq
    %v693 = vshrl.u32 %v692, 7
    %v694 = vsub.s32 %v691, %v693
    %v695 = vrot.slane %v679, %v694
    %v697 = vunpack.c.l.s4 1966171168
    %v698 = vunpack.c.0.s8 %v697
    %v699 = vlaneseq
    %v700 = vshrl.u32 %v699, 7
    %v701 = vsub.s32 %v698, %v700
    %v702 = vrot.slane %v686, %v701
    %v704 = vunpack.c.l.s4 1966171168
    %v705 = vunpack.c.0.s8 %v704
    %v706 = vlaneseq
    %v707 = vshrl.u32 %v706, 7
    %v708 = vsub.s32 %v705, %v707
    %v709 = vrot.slane %v687, %v708
    %v711 = vunpack.c.l.s4 1966171168
    %v712 = vunpack.c.0.s8 %v711
    %v713 = vlaneseq
    %v714 = vshrl.u32 %v713, 7
    %v715 = vsub.s32 %v712, %v714
    %v716 = vrot.slane %v688, %v715
    %v717 = vcombine.high %v695, %v695
    %v718 = vcombine.high %v702, %v702
    %v719 = vcombine.high %v709, %v709
    %v720 = vcombine.high %v716, %v716
    %v721 = vlaneseq
    %v722 = vshrl.u32 %v721, 7
    %v723 = vsub.s32 0, %v722
    %v724 = vrot.slane %v695, %v723
    %v725 = vlaneseq
    %v726 = vshrl.u32 %v725, 7
    %v727 = vsub.s32 0, %v726
    %v728 = vrot.slane %v709, %v727
    %v729 = vlaneseq
    %v730 = vshrl.u32 %v729, 7
    %v731 = vsub.s32 0, %v730
    %v732 = vrot.slane %v717, %v731
    %v733 = vlaneseq
    %v734 = vshrl.u32 %v733, 7
    %v735 = vsub.s32 0, %v734
    %v736 = vrot.slane %v719, %v735
    %v737 = vlaneseq
    %v738 = vshrl.u32 %v737, 7
    %v739 = vsub.s32 0, %v738
    %v740 = vrot.slane %v702, %v739
    %v741 = vlaneseq
    %v742 = vshrl.u32 %v741, 7
    %v743 = vsub.s32 0, %v742
    %v744 = vrot.slane %v716, %v743
    %v745 = vlaneseq
    %v746 = vshrl.u32 %v745, 7
    %v747 = vsub.s32 0, %v746
    %v748 = vrot.slane %v718, %v747
    %v749 = vlaneseq
    %v750 = vshrl.u32 %v749, 7
    %v751 = vsub.s32 0, %v750
    %v752 = vrot.slane %v720, %v751
    %v761 = vmul.f32 %v724, %v663
    %v762 = vmul.f32 %v728, %v664
    %v763 = vmul.f32 %v732, %v665
    %v764 = vmul.f32 %v736, %v666
    %v765 = vmul.f32 %v740, %v667
    %v766 = vmul.f32 %v744, %v668
    %v767 = vmul.f32 %v748, %v669
    %v768 = vmul.f32 %v752, %v670
    %769 = vadd.xlane.f32.xlu0 %v761
    %v770 = vpop.xlane.xlu0 %769
    %771 = vadd.xlane.f32.xlu0 %v762
    %v772 = vpop.xlane.xlu0 %771
    %773 = vadd.xlane.f32.xlu0 %v763
    %v774 = vpop.xlane.xlu0 %773
    %775 = vadd.xlane.f32.xlu0 %v764
    %v776 = vpop.xlane.xlu0 %775
    %777 = vadd.xlane.f32.xlu0 %v765
    %v778 = vpop.xlane.xlu0 %777
    %779 = vadd.xlane.f32.xlu0 %v766
    %v780 = vpop.xlane.xlu0 %779
    %781 = vadd.xlane.f32.xlu0 %v767
    %v782 = vpop.xlane.xlu0 %781
    %783 = vadd.xlane.f32.xlu0 %v768
    %v784 = vpop.xlane.xlu0 %783
    %v785 = vrot.slane %v770, 4
    %v786 = vmax.f32 %v770, %v785
    %v787 = vrot.slane %v786, 2
    %v788 = vmax.f32 %v786, %v787
    %v789 = vrot.slane %v788, 1
    %v790 = vmax.f32 %v788, %v789
    %v791 = vrot.slane %v772, 4
    %v792 = vmax.f32 %v772, %v791
    %v793 = vrot.slane %v792, 2
    %v794 = vmax.f32 %v792, %v793
    %v795 = vrot.slane %v794, 1
    %v796 = vmax.f32 %v794, %v795
    %v797 = vrot.slane %v774, 4
    %v798 = vmax.f32 %v774, %v797
    %v799 = vrot.slane %v798, 2
    %v800 = vmax.f32 %v798, %v799
    %v801 = vrot.slane %v800, 1
    %v802 = vmax.f32 %v800, %v801
    %v803 = vrot.slane %v776, 4
    %v804 = vmax.f32 %v776, %v803
    %v805 = vrot.slane %v804, 2
    %v806 = vmax.f32 %v804, %v805
    %v807 = vrot.slane %v806, 1
    %v808 = vmax.f32 %v806, %v807
    %v809 = vrot.slane %v778, 4
    %v810 = vmax.f32 %v778, %v809
    %v811 = vrot.slane %v810, 2
    %v812 = vmax.f32 %v810, %v811
    %v813 = vrot.slane %v812, 1
    %v814 = vmax.f32 %v812, %v813
    %v815 = vrot.slane %v780, 4
    %v816 = vmax.f32 %v780, %v815
    %v817 = vrot.slane %v816, 2
    %v818 = vmax.f32 %v816, %v817
    %v819 = vrot.slane %v818, 1
    %v820 = vmax.f32 %v818, %v819
    %v821 = vrot.slane %v782, 4
    %v822 = vmax.f32 %v782, %v821
    %v823 = vrot.slane %v822, 2
    %v824 = vmax.f32 %v822, %v823
    %v825 = vrot.slane %v824, 1
    %v826 = vmax.f32 %v824, %v825
    %v827 = vrot.slane %v784, 4
    %v828 = vmax.f32 %v784, %v827
    %v829 = vrot.slane %v828, 2
    %v830 = vmax.f32 %v828, %v829
    %v831 = vrot.slane %v830, 1
    %v832 = vmax.f32 %v830, %v831
    %v833 = vsub.f32 %v770, %v790
    %v834 = vsub.f32 %v772, %v796
    %v835 = vsub.f32 %v774, %v802
    %v836 = vsub.f32 %v776, %v808
    %v837 = vsub.f32 %v778, %v814
    %v838 = vsub.f32 %v780, %v820
    %v839 = vsub.f32 %v782, %v826
    %v840 = vsub.f32 %v784, %v832
    %v841 = vmul.f32 %v833, 1.442695
    %v842 = vpow.pop %v841
    %v843 = vmul.f32 %v834, 1.442695
    %v844 = vpow.pop %v843
    %v845 = vmul.f32 %v835, 1.442695
    %v846 = vpow.pop %v845
    %v847 = vmul.f32 %v836, 1.442695
    %v848 = vpow.pop %v847
    %v849 = vmul.f32 %v837, 1.442695
    %v850 = vpow.pop %v849
    %v851 = vmul.f32 %v838, 1.442695
    %v852 = vpow.pop %v851
    %v853 = vmul.f32 %v839, 1.442695
    %v854 = vpow.pop %v853
    %v855 = vmul.f32 %v840, 1.442695
    %v856 = vpow.pop %v855
    %v857 = vrot.slane %v842, 4
    %v858 = vadd.f32 %v842, %v857
    %v859 = vrot.slane %v858, 2
    %v860 = vadd.f32 %v858, %v859
    %v861 = vrot.slane %v860, 1
    %v862 = vadd.f32 %v860, %v861
    %v863 = vrot.slane %v844, 4
    %v864 = vadd.f32 %v844, %v863
    %v865 = vrot.slane %v864, 2
    %v866 = vadd.f32 %v864, %v865
    %v867 = vrot.slane %v866, 1
    %v868 = vadd.f32 %v866, %v867
    %v869 = vrot.slane %v846, 4
    %v870 = vadd.f32 %v846, %v869
    %v871 = vrot.slane %v870, 2
    %v872 = vadd.f32 %v870, %v871
    %v873 = vrot.slane %v872, 1
    %v874 = vadd.f32 %v872, %v873
    %v875 = vrot.slane %v848, 4
    %v876 = vadd.f32 %v848, %v875
    %v877 = vrot.slane %v876, 2
    %v878 = vadd.f32 %v876, %v877
    %v879 = vrot.slane %v878, 1
    %v880 = vadd.f32 %v878, %v879
    %v881 = vrot.slane %v850, 4
    %v882 = vadd.f32 %v850, %v881
    %v883 = vrot.slane %v882, 2
    %v884 = vadd.f32 %v882, %v883
    %v885 = vrot.slane %v884, 1
    %v886 = vadd.f32 %v884, %v885
    %v887 = vrot.slane %v852, 4
    %v888 = vadd.f32 %v852, %v887
    %v889 = vrot.slane %v888, 2
    %v890 = vadd.f32 %v888, %v889
    %v891 = vrot.slane %v890, 1
    %v892 = vadd.f32 %v890, %v891
    %v893 = vrot.slane %v854, 4
    %v894 = vadd.f32 %v854, %v893
    %v895 = vrot.slane %v894, 2
    %v896 = vadd.f32 %v894, %v895
    %v897 = vrot.slane %v896, 1
    %v898 = vadd.f32 %v896, %v897
    %v899 = vrot.slane %v856, 4
    %v900 = vadd.f32 %v856, %v899
    %v901 = vrot.slane %v900, 2
    %v902 = vadd.f32 %v900, %v901
    %v903 = vrot.slane %v902, 1
    %v904 = vadd.f32 %v902, %v903
    %v905 = vrcp.pop %v862
    %v906 = vrcp.pop %v868
    %v907 = vrcp.pop %v874
    %v908 = vrcp.pop %v880
    %v909 = vrcp.pop %v886
    %v910 = vrcp.pop %v892
    %v911 = vrcp.pop %v898
    %v912 = vrcp.pop %v904
    %v913 = vmul.f32 %v842, %v905
    %v914 = vmul.f32 %v844, %v906
    %v915 = vmul.f32 %v846, %v907
    %v916 = vmul.f32 %v848, %v908
    %v917 = vmul.f32 %v850, %v909
    %v918 = vmul.f32 %v852, %v910
    %v919 = vmul.f32 %v854, %v911
    %v920 = vmul.f32 %v856, %v912
    %v921 = vmul.f32 %v913, %v663
    %v922 = vmul.f32 %v914, %v664
    %v923 = vmul.f32 %v915, %v665
    %v924 = vmul.f32 %v916, %v666
    %v925 = vmul.f32 %v917, %v667
    %v926 = vmul.f32 %v918, %v668
    %v927 = vmul.f32 %v919, %v669
    %v928 = vmul.f32 %v920, %v670
    %v929 = vrot.slane %v921, 4
    %v930 = vadd.f32 %v921, %v929
    %v931 = vrot.slane %v930, 2
    %v932 = vadd.f32 %v930, %v931
    %v933 = vrot.slane %v932, 1
    %v934 = vadd.f32 %v932, %v933
    %v935 = vrot.slane %v922, 4
    %v936 = vadd.f32 %v922, %v935
    %v937 = vrot.slane %v936, 2
    %v938 = vadd.f32 %v936, %v937
    %v939 = vrot.slane %v938, 1
    %v940 = vadd.f32 %v938, %v939
    %v941 = vrot.slane %v923, 4
    %v942 = vadd.f32 %v923, %v941
    %v943 = vrot.slane %v942, 2
    %v944 = vadd.f32 %v942, %v943
    %v945 = vrot.slane %v944, 1
    %v946 = vadd.f32 %v944, %v945
    %v947 = vrot.slane %v924, 4
    %v948 = vadd.f32 %v924, %v947
    %v949 = vrot.slane %v948, 2
    %v950 = vadd.f32 %v948, %v949
    %v951 = vrot.slane %v950, 1
    %v952 = vadd.f32 %v950, %v951
    %v953 = vrot.slane %v925, 4
    %v954 = vadd.f32 %v925, %v953
    %v955 = vrot.slane %v954, 2
    %v956 = vadd.f32 %v954, %v955
    %v957 = vrot.slane %v956, 1
    %v958 = vadd.f32 %v956, %v957
    %v959 = vrot.slane %v926, 4
    %v960 = vadd.f32 %v926, %v959
    %v961 = vrot.slane %v960, 2
    %v962 = vadd.f32 %v960, %v961
    %v963 = vrot.slane %v962, 1
    %v964 = vadd.f32 %v962, %v963
    %v965 = vrot.slane %v927, 4
    %v966 = vadd.f32 %v927, %v965
    %v967 = vrot.slane %v966, 2
    %v968 = vadd.f32 %v966, %v967
    %v969 = vrot.slane %v968, 1
    %v970 = vadd.f32 %v968, %v969
    %v971 = vrot.slane %v928, 4
    %v972 = vadd.f32 %v928, %v971
    %v973 = vrot.slane %v972, 2
    %v974 = vadd.f32 %v972, %v973
    %v975 = vrot.slane %v974, 1
    %v976 = vadd.f32 %v974, %v975
    %vm985 = vcmask 1041409
    %v986 = vsel %vm985, %v940, %v934
    %vm987 = vcmask 1042434
    %v988 = vsel %vm987, %v946, %v986
    %vm989 = vcmask 1043459
    %v990 = vsel %vm989, %v952, %v988
    %vm991 = vcmask 1044484
    %v992 = vsel %vm991, %v958, %v990
    %vm993 = vcmask 1045509
    %v994 = vsel %vm993, %v964, %v992
    %vm995 = vcmask 1046534
    %v996 = vsel %vm995, %v970, %v994
    %vm997 = vcmask 1047559
    %v998 = vsel %vm997, %v976, %v996
    %v1000 = vpack.c.bf16 %v654, %v654
    %v1001 = vpack.c.bf16 %v998, %v998
    %v1002 = vld [vmem:[#allocation10] sm:$0xf]
    %v1003 = vld [vmem:[#allocation10 + $0x4] sm:$0xf]
    %v1004 = vld [vmem:[#allocation10 + $0x8] sm:$0xf]
    %v1005 = vld [vmem:[#allocation10 + $0xc] sm:$0xf]
    %v1006 = vld [vmem:[#allocation10 + $0x10] sm:$0xf]
    %v1007 = vld [vmem:[#allocation10 + $0x14] sm:$0xf]
    %v1008 = vld [vmem:[#allocation10 + $0x18] sm:$0xf]
    %v1009 = vld [vmem:[#allocation10 + $0x1c] sm:$0xf]
    %v1010 = vld [vmem:[#allocation10 + $0x20] sm:$0xf]
    %v1011 = vld [vmem:[#allocation10 + $0x24] sm:$0xf]
    %v1012 = vld [vmem:[#allocation10 + $0x28] sm:$0xf]
    %v1013 = vld [vmem:[#allocation10 + $0x2c] sm:$0xf]
    %v1014 = vld [vmem:[#allocation10 + $0x30] sm:$0xf]
    %v1015 = vld [vmem:[#allocation10 + $0x34] sm:$0xf]
    %v1016 = vld [vmem:[#allocation10 + $0x38] sm:$0xf]
    %v1017 = vld [vmem:[#allocation10 + $0x3c] sm:$0xf]
    %v1018 = vld [vmem:[#allocation10 + $0x40] sm:$0xf]
    %v1019 = vld [vmem:[#allocation10 + $0x44] sm:$0xf]
    %v1020 = vld [vmem:[#allocation10 + $0x48] sm:$0xf]
    %v1021 = vld [vmem:[#allocation10 + $0x4c] sm:$0xf]
    %v1022 = vld [vmem:[#allocation10 + $0x50] sm:$0xf]
    %v1023 = vld [vmem:[#allocation10 + $0x54] sm:$0xf]
    %v1024 = vld [vmem:[#allocation10 + $0x58] sm:$0xf]
    %v1025 = vld [vmem:[#allocation10 + $0x5c] sm:$0xf]
    %v1026 = vld [vmem:[#allocation10 + $0x60] sm:$0xf]
    %v1027 = vld [vmem:[#allocation10 + $0x64] sm:$0xf]
    %v1028 = vld [vmem:[#allocation10 + $0x68] sm:$0xf]
    %v1029 = vld [vmem:[#allocation10 + $0x6c] sm:$0xf]
    %v1030 = vld [vmem:[#allocation10 + $0x70] sm:$0xf]
    %v1031 = vld [vmem:[#allocation10 + $0x74] sm:$0xf]
    %v1032 = vld [vmem:[#allocation10 + $0x78] sm:$0xf]
    %v1033 = vld [vmem:[#allocation10 + $0x7c] sm:$0xf]
    %v1034 = vld [vmem:[#allocation12] sm:$0x1]
    %v1036 = vlaneseq
    %v1037 = vshrl.u32 %v1036, 7
    %v1038 = vsub.s32 0, %v1037
    %v1039 = vrot.slane %v1034, %v1038
    %v1073 = vunpack.c.l.b16 %v1002
    %v1074 = vunpack.c.l.b16 %v1003
    %v1075 = vunpack.c.l.b16 %v1004
    %v1076 = vunpack.c.l.b16 %v1005
    %v1077 = vunpack.c.l.b16 %v1006
    %v1078 = vunpack.c.l.b16 %v1007
    %v1079 = vunpack.c.l.b16 %v1008
    %v1080 = vunpack.c.l.b16 %v1009
    %v1081 = vunpack.c.l.b16 %v1010
    %v1082 = vunpack.c.l.b16 %v1011
    %v1083 = vunpack.c.l.b16 %v1012
    %v1084 = vunpack.c.l.b16 %v1013
    %v1085 = vunpack.c.l.b16 %v1014
    %v1086 = vunpack.c.l.b16 %v1015
    %v1087 = vunpack.c.l.b16 %v1016
    %v1088 = vunpack.c.l.b16 %v1017
    %v1089 = vunpack.c.l.b16 %v1018
    %v1090 = vunpack.c.l.b16 %v1019
    %v1091 = vunpack.c.l.b16 %v1020
    %v1092 = vunpack.c.l.b16 %v1021
    %v1093 = vunpack.c.l.b16 %v1022
    %v1094 = vunpack.c.l.b16 %v1023
    %v1095 = vunpack.c.l.b16 %v1024
    %v1096 = vunpack.c.l.b16 %v1025
    %v1097 = vunpack.c.l.b16 %v1026
    %v1098 = vunpack.c.l.b16 %v1027
    %v1099 = vunpack.c.l.b16 %v1028
    %v1100 = vunpack.c.l.b16 %v1029
    %v1101 = vunpack.c.l.b16 %v1030
    %v1102 = vunpack.c.l.b16 %v1031
    %v1103 = vunpack.c.l.b16 %v1032
    %v1104 = vunpack.c.l.b16 %v1033
    %v1105 = vpack.c.b16 %v1074, %v1073
    %v1106 = vpack.c.b16 %v1076, %v1075
    %v1107 = vpack.c.b16 %v1078, %v1077
    %v1108 = vpack.c.b16 %v1080, %v1079
    %v1109 = vpack.c.b16 %v1082, %v1081
    %v1110 = vpack.c.b16 %v1084, %v1083
    %v1111 = vpack.c.b16 %v1086, %v1085
    %v1112 = vpack.c.b16 %v1088, %v1087
    %v1113 = vpack.c.b16 %v1090, %v1089
    %v1114 = vpack.c.b16 %v1092, %v1091
    %v1115 = vpack.c.b16 %v1094, %v1093
    %v1116 = vpack.c.b16 %v1096, %v1095
    %v1117 = vpack.c.b16 %v1098, %v1097
    %v1118 = vpack.c.b16 %v1100, %v1099
    %v1119 = vpack.c.b16 %v1102, %v1101
    %v1120 = vpack.c.b16 %v1104, %v1103
    %1137 = vmatprep.subr.bf16.mxu0 0
    %1138 = vmatpush1.bf16.msra.mxu0 %v1112
    %1139 = vmatprep.subr.bf16.mxu0 0
    %1140 = vmatpush1.bf16.msra.mxu0 %v1111
    %1141 = vmatprep.subr.bf16.mxu0 0
    %1142 = vmatpush1.bf16.msra.mxu0 %v1110
    %1143 = vmatprep.subr.bf16.mxu0 0
    %1144 = vmatpush1.bf16.msra.mxu0 %v1109
    %1145 = vmatprep.subr.bf16.mxu0 0
    %1146 = vmatpush1.bf16.msra.mxu0 %v1108
    %1147 = vmatprep.subr.bf16.mxu0 0
    %1148 = vmatpush1.bf16.msra.mxu0 %v1107
    %1149 = vmatprep.subr.bf16.mxu0 0
    %1150 = vmatpush1.bf16.msra.mxu0 %v1106
    %1151 = vmatprep.subr.bf16.mxu0 0
    %1152 = vmatpush1.bf16.msra.mxu0 %v1105
    %1153 = vmatprep.subr.bf16.mxu0 0
    %1154 = vmatpush2.bf16.msra.mxu0 %v1120
    %1155 = vmatprep.subr.bf16.mxu0 0
    %1156 = vmatpush2.bf16.msra.mxu0 %v1119
    %1157 = vmatprep.subr.bf16.mxu0 0
    %1158 = vmatpush2.bf16.msra.mxu0 %v1118
    %1159 = vmatprep.subr.bf16.mxu0 0
    %1160 = vmatpush2.bf16.msra.mxu0 %v1117
    %1161 = vmatprep.subr.bf16.mxu0 0
    %1162 = vmatpush2.bf16.msra.mxu0 %v1116
    %1163 = vmatprep.subr.bf16.mxu0 0
    %1164 = vmatpush2.bf16.msra.mxu0 %v1115
    %1165 = vmatprep.subr.bf16.mxu0 0
    %1166 = vmatpush2.bf16.msra.mxu0 %v1114
    %1167 = vmatprep.subr.bf16.mxu0 0
    %1168 = vmatpush2.bf16.msra.mxu0 %v1113
    %1169 = vmatprep.mubr.bf16.mxu0 %v1001
    %1170 = vmatmul.mubr.bf16.gmra.mxu0 %v1000
    %v1171 = vpop.f32.mrf.mxu0
    %v1172 = vadd.f32 %v1039, %v1171
    %v1173 = vpop.f32.mrf.mxu0
    %v1174 = vpop.f32.mrf.mxu0
    %v1175 = vpop.f32.mrf.mxu0
    %1176 = vdwg.mxu0
    %v1177 = vtanh.pop %v1172
    %v1178 = vpack.c.bf16 %v1177, %v1177
    %1179 = vst [vmem:[%s9] sm:$0xf] %v1178
    %1180 = vst [vmem:[%s10] sm:$0xff] %v654
    // Predicated region
    $region66: #{luong_attn_decoder_forward.2} parent=1 // pred_check
      _
    $region67: #{luong_attn_decoder_forward.2} parent=1 // pred_check_branch
      %1182 = sbr.rel (0) target = $region69
    $region68: #{luong_attn_decoder_forward.2} parent=1 // pred_region
      _
    $region69: #{luong_attn_decoder_forward.2} parent=1 // pred_fallthru
      _
    // Predicated region
    $region70: #{luong_attn_decoder_forward.2} parent=1 // pred_check
      _
    $region71: #{luong_attn_decoder_forward.2} parent=1 // pred_check_branch
      %1184 = sbr.rel (0) target = $region73
    $region72: #{luong_attn_decoder_forward.2} parent=1 // pred_region
      _
    $region73: #{luong_attn_decoder_forward.2} parent=1 // pred_fallthru
      _
    // Predicated region
    $region74: #{luong_attn_decoder_forward.2} parent=1 // pred_check
      _
    $region75: #{luong_attn_decoder_forward.2} parent=1 // pred_check_branch
      %1186 = sbr.rel (0) target = $region77
    $region76: #{luong_attn_decoder_forward.2} parent=1 // pred_region
      _
    $region77: #{luong_attn_decoder_forward.2} parent=1 // pred_fallthru
      _
    // Predicated region
    $region78: #{luong_attn_decoder_forward.2} parent=1 // pred_check
      _
    $region79: #{luong_attn_decoder_forward.2} parent=1 // pred_check_branch
      %1188 = sbr.rel (0) target = $region81
    $region80: #{luong_attn_decoder_forward.2} parent=1 // pred_region
      _
    $region81: #{luong_attn_decoder_forward.2} parent=1 // pred_fallthru
      _
    %1189 = vsyncpa [#allocation3], 1
    %1190 = vsyncpa [#allocation5], 1
    %1191 = vsyncpa [#allocation8], 1
    %1192 = vsyncpa [#allocation11], 1

</llo_original>
